<compile_context>
chip_gen: v5e
topology: v5e:2x2
jax: 0.10.0
libtpu: 0.0.40
codegen_flags: <defaults>
</compile_context>

<pallas_src>
import functools

import jax
import jax.numpy as jnp
from jax.experimental import pallas as pl
from jax.experimental.pallas import tpu as pltpu

VMEM_LIMIT = 48 * 1024 * 1024  # stay under v7x's 64 MiB / TensorCore


# --------------------------------------------------------------------------
# Kernel 1: row-tiled dense affine  y = [relu](x @ W + b)
# --------------------------------------------------------------------------
def linear_kernel(x_ref, w_ref, b_ref, o_ref, *, apply_relu):
    x = x_ref[...].astype(jnp.bfloat16)          # bf16 MXU operand
    y = jnp.dot(x, w_ref[...], preferred_element_type=jnp.float32) + b_ref[...]
    if apply_relu:
        y = jnp.maximum(y, 0.0)
    o_ref[...] = y.astype(o_ref.dtype)


def linear(x, w_bf16, b, *, apply_relu, tm=128, out_dtype=jnp.float32):
    n, din = x.shape
    dout = w_bf16.shape[1]
    return pl.pallas_call(
        functools.partial(linear_kernel, apply_relu=apply_relu),
        out_shape=jax.ShapeDtypeStruct((n, dout), out_dtype),
        grid=(n // tm,),
        in_specs=[
            pl.BlockSpec((tm, din), lambda i: (i, 0)),    # row tile of activations
            pl.BlockSpec((din, dout), lambda i: (0, 0)),  # weights stay VMEM-resident
            pl.BlockSpec((1, dout), lambda i: (0, 0)),
        ],
        out_specs=pl.BlockSpec((tm, dout), lambda i: (i, 0)),
        compiler_params=pltpu.CompilerParams(
            dimension_semantics=("parallel",),
            vmem_limit_bytes=VMEM_LIMIT,
        ),
    )(x, w_bf16, b)


# --------------------------------------------------------------------------
# Kernel 2: fully fused GCN residual block, tiled over (row tiles i, adj tiles k)
#   acc_i  = sum_k A_hat[i,k] @ H[k]                        (bf16 MXU, f32 acc)
#   out_i  = BN( relu( relu(acc_i @ Wg + bg) @ Wl + bl ) + H[i] )
# (Uses A_hat @ (H Wg) == (A_hat @ H) Wg so the feature transform runs once
#  per output row tile in the finalize step — no intermediate HBM round-trip.)
# --------------------------------------------------------------------------
def gcn_block_kernel(a_ref, hk_ref, hi_ref, wg_ref, bg_ref, wl_ref, bl_ref,
                     bn_scale_ref, bn_shift_ref, o_ref, acc_ref):
    k = pl.program_id(1)

    @pl.when(k == 0)
    def _():
        acc_ref[...] = jnp.zeros_like(acc_ref)

    # Neighbourhood aggregation: normalized-adjacency tile times feature rows.
    acc_ref[...] += jnp.dot(a_ref[...], hk_ref[...].astype(jnp.bfloat16),
                            preferred_element_type=jnp.float32)

    @pl.when(k == pl.num_programs(1) - 1)
    def _():
        g = jnp.dot(acc_ref[...].astype(jnp.bfloat16), wg_ref[...],
                    preferred_element_type=jnp.float32) + bg_ref[...]
        g = jnp.maximum(g, 0.0)                                   # GCNConv + ReLU
        g = jnp.dot(g.astype(jnp.bfloat16), wl_ref[...],
                    preferred_element_type=jnp.float32) + bl_ref[...]
        g = jnp.maximum(g, 0.0) + hi_ref[...]                     # Linear + ReLU + residual
        g = g * bn_scale_ref[...] + bn_shift_ref[...]             # folded eval-mode BN
        o_ref[...] = g.astype(o_ref.dtype)                        # dropout = identity (eval)


def gcn_block(a_bf16, h, w_gcn_bf16, b_gcn, w_lin_bf16, b_lin,
              bn_scale, bn_shift, *, tm=128, tk=128):
    n, hid = h.shape
    return pl.pallas_call(
        gcn_block_kernel,
        out_shape=jax.ShapeDtypeStruct((n, hid), jnp.float32),
        grid=(n // tm, n // tk),
        in_specs=[
            pl.BlockSpec((tm, tk), lambda i, k: (i, k)),     # A_hat tile (bf16)
            pl.BlockSpec((tk, hid), lambda i, k: (k, 0)),    # H rows for this k tile
            pl.BlockSpec((tm, hid), lambda i, k: (i, 0)),    # residual rows
            pl.BlockSpec((hid, hid), lambda i, k: (0, 0)),   # W_gcn (VMEM resident)
            pl.BlockSpec((1, hid), lambda i, k: (0, 0)),     # b_gcn
            pl.BlockSpec((hid, hid), lambda i, k: (0, 0)),   # W_lin (VMEM resident)
            pl.BlockSpec((1, hid), lambda i, k: (0, 0)),     # b_lin
            pl.BlockSpec((1, hid), lambda i, k: (0, 0)),     # bn scale
            pl.BlockSpec((1, hid), lambda i, k: (0, 0)),     # bn shift
        ],
        out_specs=pl.BlockSpec((tm, hid), lambda i, k: (i, 0)),   # constant over k
        scratch_shapes=[pltpu.VMEM((tm, hid), jnp.float32)],
        compiler_params=pltpu.CompilerParams(
            dimension_semantics=("parallel", "arbitrary"),
            vmem_limit_bytes=VMEM_LIMIT,
        ),
    )(a_bf16, h, h, w_gcn_bf16, b_gcn, w_lin_bf16, b_lin, bn_scale, bn_shift)


# --------------------------------------------------------------------------
# Full FGCN forward (plain-JAX glue around the Pallas kernels)
# --------------------------------------------------------------------------
def fgcn_forward(x, a_hat, params, *, tm=128, tk=128):
    a_bf16 = a_hat.astype(jnp.bfloat16)          # halve HBM traffic for A_hat

    h = linear(x, params["stem_w"], params["stem_b"], apply_relu=True, tm=tm)
    for blk in params["blocks"]:
        h = gcn_block(a_bf16, h, blk["w_gcn"], blk["b_gcn"], blk["w_lin"],
                      blk["b_lin"], blk["bn_scale"], blk["bn_shift"],
                      tm=tm, tk=tk)
    return linear(h, params["out_w"], params["out_b"], apply_relu=False, tm=tm)


# --------------------------------------------------------------------------
# Graph / parameter construction (plain-JAX glue)
# --------------------------------------------------------------------------
def build_normalized_adjacency(edge_index, num_nodes):
    """Dense D^-1/2 (A + I) D^-1/2 as used by torch_geometric GCNConv defaults."""
    src, dst = edge_index[0], edge_index[1]
    loops = jnp.arange(num_nodes, dtype=edge_index.dtype)
    src = jnp.concatenate([src, loops])
    dst = jnp.concatenate([dst, loops])
    ones = jnp.ones(src.shape[0], jnp.float32)
    deg = jnp.zeros((num_nodes,), jnp.float32).at[dst].add(ones)
    deg_inv_sqrt = jnp.where(deg > 0, 1.0 / jnp.sqrt(deg), 0.0)
    norm = deg_inv_sqrt[src] * deg_inv_sqrt[dst]
    return jnp.zeros((num_nodes, num_nodes), jnp.float32).at[dst, src].add(norm)


def init_params(key, in_size, hidden, out_size, n_blocks):
    keys = iter(jax.random.split(key, 8 + 8 * n_blocks))

    def uniform(k, shape, fan_in):
        s = 1.0 / jnp.sqrt(fan_in)
        return jax.random.uniform(k, shape, jnp.float32, -s, s)

    params = {
        "stem_w": uniform(next(keys), (in_size, hidden), in_size).astype(jnp.bfloat16),
        "stem_b": uniform(next(keys), (1, hidden), in_size),
        "out_w": uniform(next(keys), (hidden, out_size), hidden).astype(jnp.bfloat16),
        "out_b": uniform(next(keys), (1, out_size), hidden),
        "blocks": [],
    }
    eps = 1e-5
    for _ in range(n_blocks):
        gamma = jax.random.uniform(next(keys), (1, hidden), jnp.float32, 0.5, 1.5)
        beta = 0.1 * jax.random.normal(next(keys), (1, hidden), jnp.float32)
        r_mean = 0.1 * jax.random.normal(next(keys), (1, hidden), jnp.float32)
        r_var = jax.random.uniform(next(keys), (1, hidden), jnp.float32, 0.5, 1.5)
        scale = gamma / jnp.sqrt(r_var + eps)
        shift = beta - r_mean * scale
        params["blocks"].append({
            "w_gcn": uniform(next(keys), (hidden, hidden), hidden).astype(jnp.bfloat16),
            "b_gcn": uniform(next(keys), (1, hidden), hidden),
            "w_lin": uniform(next(keys), (hidden, hidden), hidden).astype(jnp.bfloat16),
            "b_lin": uniform(next(keys), (1, hidden), hidden),
            "bn_scale": scale,
            "bn_shift": shift,
        })
    return params


# --------------------------------------------------------------------------
# Pure-JAX reference mirroring the kernels' bf16/f32 math
# --------------------------------------------------------------------------
def fgcn_reference(x, a_hat, params):
    a_bf16 = a_hat.astype(jnp.bfloat16)

    def lin(h, w_bf16, b, relu):
        y = jnp.dot(h.astype(jnp.bfloat16), w_bf16,
                    preferred_element_type=jnp.float32) + b
        return jnp.maximum(y, 0.0) if relu else y

    h = lin(x, params["stem_w"], params["stem_b"], True)
    for blk in params["blocks"]:
        agg = jnp.dot(a_bf16, h.astype(jnp.bfloat16),
                      preferred_element_type=jnp.float32)
        g = jnp.dot(agg.astype(jnp.bfloat16), blk["w_gcn"],
                    preferred_element_type=jnp.float32) + blk["b_gcn"]
        g = jnp.maximum(g, 0.0)
        g = jnp.dot(g.astype(jnp.bfloat16), blk["w_lin"],
                    preferred_element_type=jnp.float32) + blk["b_lin"]
        g = jnp.maximum(g, 0.0) + h
        h = g * blk["bn_scale"] + blk["bn_shift"]
    return lin(h, params["out_w"], params["out_b"], False)


if __name__ == "__main__":
    num_nodes, in_size, hidden, out_size, n_blocks = 256, 64, 128, 32, 2

    key = jax.random.PRNGKey(0)
    kx, kp = jax.random.split(key)

    # Node features.
    x = jax.random.normal(kx, (num_nodes, in_size), jnp.float32)

    # Deterministic small graph: ring edges (both directions), E = 512.
    idx = jnp.arange(num_nodes, dtype=jnp.int32)
    src = jnp.concatenate([idx, (idx + 1) % num_nodes])
    dst = jnp.concatenate([(idx + 1) % num_nodes, idx])
    edge_index = jnp.stack([src, dst], axis=0)

    a_hat = build_normalized_adjacency(edge_index, num_nodes)
    params = init_params(kp, in_size, hidden, out_size, n_blocks)

    fwd = jax.jit(fgcn_forward)
    out = jax.block_until_ready(fwd(x, a_hat, params))

    ref = fgcn_reference(x, a_hat, params)
    assert out.shape == (num_nodes, out_size)
    err = jnp.max(jnp.abs(out - ref))
    assert jnp.allclose(out, ref, atol=2e-2, rtol=2e-2), f"mismatch vs reference, max abs err {err}"

    print("KERNEL_OK")
</pallas_src>

<mosaic_0001>
module attributes {stable_mosaic.version = 11 : i64} {
  func.func @linear_kernel(%arg0: i32, %arg1: memref<128x64xf32, #tpu.memory_space<vmem>>, %arg2: memref<64x128xbf16, #tpu.memory_space<vmem>>, %arg3: memref<1x128xf32, #tpu.memory_space<vmem>>, %arg4: memref<128x128xf32, #tpu.memory_space<vmem>>) attributes {dimension_semantics = [#tpu.dimension_semantics<parallel>], iteration_bounds = array<i64: 2>, scalar_prefetch = 0 : i64, scratch_operands = 0 : i64, tpu.core_type = #tpu.core_type<tc>, window_params = [{transform_indices = @transform_0, window_bounds = array<i64: 128, 64>}, {pipeline_mode = #tpu.pipeline_mode<synchronous>, transform_indices = @transform_1, window_bounds = array<i64: 64, 128>}, {pipeline_mode = #tpu.pipeline_mode<synchronous>, transform_indices = @transform_2, window_bounds = array<i64: 1, 128>}, {transform_indices = @transform_3, window_bounds = array<i64: 128, 128>}]} {
    %c0 = arith.constant 0 : index
    %c0_0 = arith.constant 0 : index
    %0 = vector.load %arg1[%c0, %c0_0] : memref<128x64xf32, #tpu.memory_space<vmem>>, vector<128x64xf32>
    %1 = arith.truncf %0 : vector<128x64xf32> to vector<128x64xbf16>
    %c0_1 = arith.constant 0 : index
    %c0_2 = arith.constant 0 : index
    %2 = vector.load %arg2[%c0_1, %c0_2] : memref<64x128xbf16, #tpu.memory_space<vmem>>, vector<64x128xbf16>
    %cst = arith.constant dense<0.000000e+00> : vector<128x128xf32>
    %3 = tpu.matmul %1, %2, %cst {dimension_numbers = #tpu.dot_dimension_numbers<[1], [0], [0], [1], [0, 0, 1, 1], [], []>} : vector<128x64xbf16>, vector<64x128xbf16>, vector<128x128xf32> -> vector<128x128xf32>
    %c0_3 = arith.constant 0 : index
    %c0_4 = arith.constant 0 : index
    %4 = vector.load %arg3[%c0_3, %c0_4] : memref<1x128xf32, #tpu.memory_space<vmem>>, vector<1x128xf32>
    %5 = vector.broadcast %4 : vector<1x128xf32> to vector<128x128xf32>
    %6 = arith.addf %3, %5 : vector<128x128xf32>
    %cst_5 = arith.constant 0.000000e+00 : f32
    %7 = vector.broadcast %cst_5 : f32 to vector<128x128xf32>
    %8 = arith.maximumf %6, %7 : vector<128x128xf32>
    %c0_6 = arith.constant 0 : index
    %c0_7 = arith.constant 0 : index
    %9 = vector.load %arg4[%c0_6, %c0_7] : memref<128x128xf32, #tpu.memory_space<vmem>>, vector<128x128xf32>
    tpu.vector_store %arg4[%c0_6, %c0_7], %8 {strides = array<i32>} : memref<128x128xf32, #tpu.memory_space<vmem>>, vector<128x128xf32>,
    return
  }
  func.func @transform_0(%arg0: i32) -> (i32, i32) {
    %c0_i32 = arith.constant 0 : i32
    %c0_i32_0 = arith.constant 0 : i32
    return %arg0, %c0_i32 : i32, i32
  }
  func.func @transform_1(%arg0: i32) -> (i32, i32) {
    %c0_i32 = arith.constant 0 : i32
    %c0_i32_0 = arith.constant 0 : i32
    %c0_i32_1 = arith.constant 0 : i32
    return %c0_i32, %c0_i32_0 : i32, i32
  }
  func.func @transform_2(%arg0: i32) -> (i32, i32) {
    %c0_i32 = arith.constant 0 : i32
    %c0_i32_0 = arith.constant 0 : i32
    %c0_i32_1 = arith.constant 0 : i32
    return %c0_i32, %c0_i32_0 : i32, i32
  }
  func.func @transform_3(%arg0: i32) -> (i32, i32) {
    %c0_i32 = arith.constant 0 : i32
    %c0_i32_0 = arith.constant 0 : i32
    return %arg0, %c0_i32 : i32, i32
  }
}

module attributes {stable_mosaic.version = 11 : i64} {
  func.func @gcn_block_kernel(%arg0: i32, %arg1: i32, %arg2: memref<128x128xbf16, #tpu.memory_space<vmem>>, %arg3: memref<128x128xf32, #tpu.memory_space<vmem>>, %arg4: memref<128x128xf32, #tpu.memory_space<vmem>>, %arg5: memref<128x128xbf16, #tpu.memory_space<vmem>>, %arg6: memref<1x128xf32, #tpu.memory_space<vmem>>, %arg7: memref<128x128xbf16, #tpu.memory_space<vmem>>, %arg8: memref<1x128xf32, #tpu.memory_space<vmem>>, %arg9: memref<1x128xf32, #tpu.memory_space<vmem>>, %arg10: memref<1x128xf32, #tpu.memory_space<vmem>>, %arg11: memref<128x128xf32, #tpu.memory_space<vmem>>, %arg12: memref<128x128xf32, #tpu.memory_space<vmem>>) attributes {dimension_semantics = [#tpu.dimension_semantics<parallel>, #tpu.dimension_semantics<arbitrary>], iteration_bounds = array<i64: 2, 2>, scalar_prefetch = 0 : i64, scratch_operands = 1 : i64, tpu.core_type = #tpu.core_type<tc>, window_params = [{transform_indices = @transform_0, window_bounds = array<i64: 128, 128>}, {transform_indices = @transform_1, window_bounds = array<i64: 128, 128>}, {transform_indices = @transform_2, window_bounds = array<i64: 128, 128>}, {pipeline_mode = #tpu.pipeline_mode<synchronous>, transform_indices = @transform_3, window_bounds = array<i64: 128, 128>}, {pipeline_mode = #tpu.pipeline_mode<synchronous>, transform_indices = @transform_4, window_bounds = array<i64: 1, 128>}, {pipeline_mode = #tpu.pipeline_mode<synchronous>, transform_indices = @transform_5, window_bounds = array<i64: 128, 128>}, {pipeline_mode = #tpu.pipeline_mode<synchronous>, transform_indices = @transform_6, window_bounds = array<i64: 1, 128>}, {pipeline_mode = #tpu.pipeline_mode<synchronous>, transform_indices = @transform_7, window_bounds = array<i64: 1, 128>}, {pipeline_mode = #tpu.pipeline_mode<synchronous>, transform_indices = @transform_8, window_bounds = array<i64: 1, 128>}, {transform_indices = @transform_9, window_bounds = array<i64: 128, 128>}]} {
    %c0_i32 = arith.constant 0 : i32
    %0 = arith.cmpi eq, %arg1, %c0_i32 : i32
    %1 = arith.extui %0 : i1 to i32
    %c0_i32_0 = arith.constant 0 : i32
    %2 = arith.cmpi ne, %1, %c0_i32_0 : i32
    scf.if %2 {
      %cst_9 = arith.constant 0.000000e+00 : f32
      %13 = vector.broadcast %cst_9 : f32 to vector<128x128xf32>
      %c0_10 = arith.constant 0 : index
      %c0_11 = arith.constant 0 : index
      %14 = vector.load %arg12[%c0_10, %c0_11] : memref<128x128xf32, #tpu.memory_space<vmem>>, vector<128x128xf32>
      tpu.vector_store %arg12[%c0_10, %c0_11], %13 {strides = array<i32>} : memref<128x128xf32, #tpu.memory_space<vmem>>, vector<128x128xf32>,
    } else {
    }
    %c0 = arith.constant 0 : index
    %c0_1 = arith.constant 0 : index
    %3 = vector.load %arg12[%c0, %c0_1] : memref<128x128xf32, #tpu.memory_space<vmem>>, vector<128x128xf32>
    %c0_2 = arith.constant 0 : index
    %c0_3 = arith.constant 0 : index
    %4 = vector.load %arg2[%c0_2, %c0_3] : memref<128x128xbf16, #tpu.memory_space<vmem>>, vector<128x128xbf16>
    %c0_4 = arith.constant 0 : index
    %c0_5 = arith.constant 0 : index
    %5 = vector.load %arg3[%c0_4, %c0_5] : memref<128x128xf32, #tpu.memory_space<vmem>>, vector<128x128xf32>
    %6 = arith.truncf %5 : vector<128x128xf32> to vector<128x128xbf16>
    %cst = arith.constant dense<0.000000e+00> : vector<128x128xf32>
    %7 = tpu.matmul %4, %6, %cst {dimension_numbers = #tpu.dot_dimension_numbers<[1], [0], [0], [1], [0, 0, 1, 1], [], []>} : vector<128x128xbf16>, vector<128x128xbf16>, vector<128x128xf32> -> vector<128x128xf32>
    %8 = arith.addf %3, %7 : vector<128x128xf32>
    %c0_6 = arith.constant 0 : index
    %c0_7 = arith.constant 0 : index
    %9 = vector.load %arg12[%c0_6, %c0_7] : memref<128x128xf32, #tpu.memory_space<vmem>>, vector<128x128xf32>
    tpu.vector_store %arg12[%c0_6, %c0_7], %8 {strides = array<i32>} : memref<128x128xf32, #tpu.memory_space<vmem>>, vector<128x128xf32>,
    %c1_i32 = arith.constant 1 : i32
    %10 = arith.cmpi eq, %arg1, %c1_i32 : i32
    %11 = arith.extui %10 : i1 to i32
    %c0_i32_8 = arith.constant 0 : i32
    %12 = arith.cmpi ne, %11, %c0_i32_8 : i32
    scf.if %12 {
      %c0_9 = arith.constant 0 : index
      %c0_10 = arith.constant 0 : index
      %13 = vector.load %arg12[%c0_9, %c0_10] : memref<128x128xf32, #tpu.memory_space<vmem>>, vector<128x128xf32>
      %14 = arith.truncf %13 : vector<128x128xf32> to vector<128x128xbf16>
      %c0_11 = arith.constant 0 : index
      %c0_12 = arith.constant 0 : index
      %15 = vector.load %arg5[%c0_11, %c0_12] : memref<128x128xbf16, #tpu.memory_space<vmem>>, vector<128x128xbf16>
      %cst_13 = arith.constant dense<0.000000e+00> : vector<128x128xf32>
      %16 = tpu.matmul %14, %15, %cst_13 {dimension_numbers = #tpu.dot_dimension_numbers<[1], [0], [0], [1], [0, 0, 1, 1], [], []>} : vector<128x128xbf16>, vector<128x128xbf16>, vector<128x128xf32> -> vector<128x128xf32>
      %c0_14 = arith.constant 0 : index
      %c0_15 = arith.constant 0 : index
      %17 = vector.load %arg6[%c0_14, %c0_15] : memref<1x128xf32, #tpu.memory_space<vmem>>, vector<1x128xf32>
      %18 = vector.broadcast %17 : vector<1x128xf32> to vector<128x128xf32>
      %19 = arith.addf %16, %18 : vector<128x128xf32>
      %cst_16 = arith.constant 0.000000e+00 : f32
      %20 = vector.broadcast %cst_16 : f32 to vector<128x128xf32>
      %21 = arith.maximumf %19, %20 : vector<128x128xf32>
      %22 = arith.truncf %21 : vector<128x128xf32> to vector<128x128xbf16>
      %c0_17 = arith.constant 0 : index
      %c0_18 = arith.constant 0 : index
      %23 = vector.load %arg7[%c0_17, %c0_18] : memref<128x128xbf16, #tpu.memory_space<vmem>>, vector<128x128xbf16>
      %cst_19 = arith.constant dense<0.000000e+00> : vector<128x128xf32>
      %24 = tpu.matmul %22, %23, %cst_19 {dimension_numbers = #tpu.dot_dimension_numbers<[1], [0], [0], [1], [0, 0, 1, 1], [], []>} : vector<128x128xbf16>, vector<128x128xbf16>, vector<128x128xf32> -> vector<128x128xf32>
      %c0_20 = arith.constant 0 : index
      %c0_21 = arith.constant 0 : index
      %25 = vector.load %arg8[%c0_20, %c0_21] : memref<1x128xf32, #tpu.memory_space<vmem>>, vector<1x128xf32>
      %26 = vector.broadcast %25 : vector<1x128xf32> to vector<128x128xf32>
      %27 = arith.addf %24, %26 : vector<128x128xf32>
      %cst_22 = arith.constant 0.000000e+00 : f32
      %28 = vector.broadcast %cst_22 : f32 to vector<128x128xf32>
      %29 = arith.maximumf %27, %28 : vector<128x128xf32>
      %c0_23 = arith.constant 0 : index
      %c0_24 = arith.constant 0 : index
      %30 = vector.load %arg4[%c0_23, %c0_24] : memref<128x128xf32, #tpu.memory_space<vmem>>, vector<128x128xf32>
      %31 = arith.addf %29, %30 : vector<128x128xf32>
      %c0_25 = arith.constant 0 : index
      %c0_26 = arith.constant 0 : index
      %32 = vector.load %arg9[%c0_25, %c0_26] : memref<1x128xf32, #tpu.memory_space<vmem>>, vector<1x128xf32>
      %33 = vector.broadcast %32 : vector<1x128xf32> to vector<128x128xf32>
      %34 = arith.mulf %31, %33 : vector<128x128xf32>
      %c0_27 = arith.constant 0 : index
      %c0_28 = arith.constant 0 : index
      %35 = vector.load %arg10[%c0_27, %c0_28] : memref<1x128xf32, #tpu.memory_space<vmem>>, vector<1x128xf32>
      %36 = vector.broadcast %35 : vector<1x128xf32> to vector<128x128xf32>
      %37 = arith.addf %34, %36 : vector<128x128xf32>
      %c0_29 = arith.constant 0 : index
      %c0_30 = arith.constant 0 : index
      %38 = vector.load %arg11[%c0_29, %c0_30] : memref<128x128xf32, #tpu.memory_space<vmem>>, vector<128x128xf32>
      tpu.vector_store %arg11[%c0_29, %c0_30], %37 {strides = array<i32>} : memref<128x128xf32, #tpu.memory_space<vmem>>, vector<128x128xf32>,
    } else {
    }
    return
  }
  func.func @transform_0(%arg0: i32, %arg1: i32) -> (i32, i32) {
    %c0_i32 = arith.constant 0 : i32
    return %arg0, %arg1 : i32, i32
  }
  func.func @transform_1(%arg0: i32, %arg1: i32) -> (i32, i32) {
    %c0_i32 = arith.constant 0 : i32
    %c0_i32_0 = arith.constant 0 : i32
    return %arg1, %c0_i32 : i32, i32
  }
  func.func @transform_2(%arg0: i32, %arg1: i32) -> (i32, i32) {
    %c0_i32 = arith.constant 0 : i32
    %c0_i32_0 = arith.constant 0 : i32
    return %arg0, %c0_i32 : i32, i32
  }
  func.func @transform_3(%arg0: i32, %arg1: i32) -> (i32, i32) {
    %c0_i32 = arith.constant 0 : i32
    %c0_i32_0 = arith.constant 0 : i32
    %c0_i32_1 = arith.constant 0 : i32
    return %c0_i32, %c0_i32_0 : i32, i32
  }
  func.func @transform_4(%arg0: i32, %arg1: i32) -> (i32, i32) {
    %c0_i32 = arith.constant 0 : i32
    %c0_i32_0 = arith.constant 0 : i32
    %c0_i32_1 = arith.constant 0 : i32
    return %c0_i32, %c0_i32_0 : i32, i32
  }
  func.func @transform_5(%arg0: i32, %arg1: i32) -> (i32, i32) {
    %c0_i32 = arith.constant 0 : i32
    %c0_i32_0 = arith.constant 0 : i32
    %c0_i32_1 = arith.constant 0 : i32
    return %c0_i32, %c0_i32_0 : i32, i32
  }
  func.func @transform_6(%arg0: i32, %arg1: i32) -> (i32, i32) {
    %c0_i32 = arith.constant 0 : i32
    %c0_i32_0 = arith.constant 0 : i32
    %c0_i32_1 = arith.constant 0 : i32
    return %c0_i32, %c0_i32_0 : i32, i32
  }
  func.func @transform_7(%arg0: i32, %arg1: i32) -> (i32, i32) {
    %c0_i32 = arith.constant 0 : i32
    %c0_i32_0 = arith.constant 0 : i32
    %c0_i32_1 = arith.constant 0 : i32
    return %c0_i32, %c0_i32_0 : i32, i32
  }
  func.func @transform_8(%arg0: i32, %arg1: i32) -> (i32, i32) {
    %c0_i32 = arith.constant 0 : i32
    %c0_i32_0 = arith.constant 0 : i32
    %c0_i32_1 = arith.constant 0 : i32
    return %c0_i32, %c0_i32_0 : i32, i32
  }
  func.func @transform_9(%arg0: i32, %arg1: i32) -> (i32, i32) {
    %c0_i32 = arith.constant 0 : i32
    %c0_i32_0 = arith.constant 0 : i32
    return %arg0, %c0_i32 : i32, i32
  }
}

module attributes {stable_mosaic.version = 11 : i64} {
  func.func @linear_kernel(%arg0: i32, %arg1: memref<128x128xf32, #tpu.memory_space<vmem>>, %arg2: memref<128x32xbf16, #tpu.memory_space<vmem>>, %arg3: memref<1x32xf32, #tpu.memory_space<vmem>>, %arg4: memref<128x32xf32, #tpu.memory_space<vmem>>) attributes {dimension_semantics = [#tpu.dimension_semantics<parallel>], iteration_bounds = array<i64: 2>, scalar_prefetch = 0 : i64, scratch_operands = 0 : i64, tpu.core_type = #tpu.core_type<tc>, window_params = [{transform_indices = @transform_0, window_bounds = array<i64: 128, 128>}, {pipeline_mode = #tpu.pipeline_mode<synchronous>, transform_indices = @transform_1, window_bounds = array<i64: 128, 32>}, {pipeline_mode = #tpu.pipeline_mode<synchronous>, transform_indices = @transform_2, window_bounds = array<i64: 1, 32>}, {transform_indices = @transform_3, window_bounds = array<i64: 128, 32>}]} {
    %c0 = arith.constant 0 : index
    %c0_0 = arith.constant 0 : index
    %0 = vector.load %arg1[%c0, %c0_0] : memref<128x128xf32, #tpu.memory_space<vmem>>, vector<128x128xf32>
    %1 = arith.truncf %0 : vector<128x128xf32> to vector<128x128xbf16>
    %c0_1 = arith.constant 0 : index
    %c0_2 = arith.constant 0 : index
    %2 = vector.load %arg2[%c0_1, %c0_2] : memref<128x32xbf16, #tpu.memory_space<vmem>>, vector<128x32xbf16>
    %cst = arith.constant dense<0.000000e+00> : vector<128x32xf32>
    %3 = tpu.matmul %1, %2, %cst {dimension_numbers = #tpu.dot_dimension_numbers<[1], [0], [0], [1], [0, 0, 1, 1], [], []>} : vector<128x128xbf16>, vector<128x32xbf16>, vector<128x32xf32> -> vector<128x32xf32>
    %c0_3 = arith.constant 0 : index
    %c0_4 = arith.constant 0 : index
    %4 = vector.load %arg3[%c0_3, %c0_4] : memref<1x32xf32, #tpu.memory_space<vmem>>, vector<1x32xf32>
    %5 = vector.broadcast %4 : vector<1x32xf32> to vector<128x32xf32>
    %6 = arith.addf %3, %5 : vector<128x32xf32>
    %c0_5 = arith.constant 0 : index
    %c0_6 = arith.constant 0 : index
    %7 = vector.load %arg4[%c0_5, %c0_6] : memref<128x32xf32, #tpu.memory_space<vmem>>, vector<128x32xf32>
    tpu.vector_store %arg4[%c0_5, %c0_6], %6 {strides = array<i32>} : memref<128x32xf32, #tpu.memory_space<vmem>>, vector<128x32xf32>,
    return
  }
  func.func @transform_0(%arg0: i32) -> (i32, i32) {
    %c0_i32 = arith.constant 0 : i32
    %c0_i32_0 = arith.constant 0 : i32
    return %arg0, %c0_i32 : i32, i32
  }
  func.func @transform_1(%arg0: i32) -> (i32, i32) {
    %c0_i32 = arith.constant 0 : i32
    %c0_i32_0 = arith.constant 0 : i32
    %c0_i32_1 = arith.constant 0 : i32
    return %c0_i32, %c0_i32_0 : i32, i32
  }
  func.func @transform_2(%arg0: i32) -> (i32, i32) {
    %c0_i32 = arith.constant 0 : i32
    %c0_i32_0 = arith.constant 0 : i32
    %c0_i32_1 = arith.constant 0 : i32
    return %c0_i32, %c0_i32_0 : i32, i32
  }
  func.func @transform_3(%arg0: i32) -> (i32, i32) {
    %c0_i32 = arith.constant 0 : i32
    %c0_i32_0 = arith.constant 0 : i32
    return %arg0, %c0_i32 : i32, i32
  }
}

</mosaic_0001>

<llo_original>
// kernel: fgcn_forward.4
$region0: #{fgcn_forward.4}
  #allocation0 [shape = 'u32[]', space=smem, size = 0x4, offset = 0x4, fixed_abs, tag = 'smem constant byte address 0x4 - core index']
  #allocation1 [shape = 'u32[72,128]{1,0:T(1,128)}', space=vmem, size = 0x9000, scoped, tag = 'internal scratch']
  %s0 = inlined_call_operand.vmem [shape: f32[256,64], index: 0, kind: input, shape index: {}]
  %s1 = inlined_call_operand.vmem [shape: bf16[64,128], index: 1, kind: input, shape index: {}]
  %s2 = inlined_call_operand.vmem [shape: f32[1,128], index: 2, kind: input, shape index: {}]
  %s3 = inlined_call_operand.vmem [shape: f32[256,128], index: 3, kind: output, shape index: {}]
  %s4 = sld [smem:[#allocation0]]
  $region45: #{fgcn_forward.4} parent=0
    _
  %s6 = ssub.s32 1, %s4
  %s7 = scalar_select 0, %s6, %s4
  loop: start=0, step=1, limit=4
  $region2: #{fgcn_forward.4} parent=0 // loop_pre_header
    _
  $region3: #{fgcn_forward.4} parent=0 // loop_header
    %s9 = sphi 0, %s13
    %p10 = scmp.ge.s32.totalorder %s9, 4
    %s19 = sphi 0, %s21
    %s22 = sphi 0, %s19
    %s23 = sphi 0, %s22
    %s39 = sphi 0, %s23
    %s43 = sphi 0, %s43
    %s45 = sphi 0, %s43
    %s46 = sphi 0, %s45
    %s60 = sphi 0, %s46
    %s64 = sphi 0, %s64
    %s66 = sphi 0, %s64
    %s67 = sphi 0, %s66
    %s81 = sphi 0, %s67
    %s87 = sphi 0, %s89
    %s90 = sphi 0, %s87
    %s91 = sphi 0, %s90
    %s107 = sphi 0, %s91
  $region4: #{fgcn_forward.4} parent=0 // loop_header_branch
    %12 = sbr.rel (%p10) target = $region8
  $region5: #{fgcn_forward.4} parent=0 // loop_body
    %s14 = ssub.s32 %s9, 1
    %s15 = ssub.s32 %s9, 2
    %s16 = sadd.s32 %s9, 1
    %s17 = ssub.s32 %s9, %s16
    %p18 = scmp.eq.s32.totalorder %s17, 0
    %s20 = sadd.s32 %s19, 1
    %s21 = scalar_select %p18, %s19, %s20
    %p24 = pneg %p18
    %p25 = scmp.eq.s32.totalorder %s9, 1
    %p26 = por %p24, %p25
    %p27 = scmp.ne.s32.totalorder %s19, %s22
    %p28 = scmp.eq.s32.totalorder %s9, 0
    %p29 = por %p27, %p28
    %p30 = scmp.ne.s32.totalorder %s19, %s22
    %p31 = scmp.eq.s32.totalorder %s14, 1
    %p32 = por %p30, %p31
    %p33 = scmp.ne.s32.totalorder %s22, %s23
    %p34 = scmp.eq.s32.totalorder %s14, 0
    %p35 = por %p33, %p34
    %p36 = scmp.ne.s32.totalorder %s22, %s23
    %p37 = scmp.eq.s32.totalorder %s15, 1
    %p38 = por %p36, %p37
    %p40 = scmp.ne.s32.totalorder %s23, %s39
    %p41 = scmp.eq.s32.totalorder %s15, 0
    %p42 = por %p40, %p41
    %s44 = sadd.s32 %s43, 1
    %p47 = scmp.eq.s32.totalorder %s9, 1
    %p48 = scmp.ne.s32.totalorder %s43, %s45
    %p49 = scmp.eq.s32.totalorder %s9, 0
    %p50 = por %p48, %p49
    %p51 = scmp.ne.s32.totalorder %s43, %s45
    %p52 = scmp.eq.s32.totalorder %s14, 1
    %p53 = por %p51, %p52
    %p54 = scmp.ne.s32.totalorder %s45, %s46
    %p55 = scmp.eq.s32.totalorder %s14, 0
    %p56 = por %p54, %p55
    %p57 = scmp.ne.s32.totalorder %s45, %s46
    %p58 = scmp.eq.s32.totalorder %s15, 1
    %p59 = por %p57, %p58
    %p61 = scmp.ne.s32.totalorder %s46, %s60
    %p62 = scmp.eq.s32.totalorder %s15, 0
    %p63 = por %p61, %p62
    %s65 = sadd.s32 %s64, 1
    %p68 = scmp.eq.s32.totalorder %s9, 1
    %p69 = scmp.ne.s32.totalorder %s64, %s66
    %p70 = scmp.eq.s32.totalorder %s9, 0
    %p71 = por %p69, %p70
    %p72 = scmp.ne.s32.totalorder %s64, %s66
    %p73 = scmp.eq.s32.totalorder %s14, 1
    %p74 = por %p72, %p73
    %p75 = scmp.ne.s32.totalorder %s66, %s67
    %p76 = scmp.eq.s32.totalorder %s14, 0
    %p77 = por %p75, %p76
    %p78 = scmp.ne.s32.totalorder %s66, %s67
    %p79 = scmp.eq.s32.totalorder %s15, 1
    %p80 = por %p78, %p79
    %p82 = scmp.ne.s32.totalorder %s67, %s81
    %p83 = scmp.eq.s32.totalorder %s15, 0
    %p84 = por %p82, %p83
    %s85 = ssub.s32 %s9, %s16
    %p86 = scmp.eq.s32.totalorder %s85, 0
    %s88 = sadd.s32 %s87, 1
    %s89 = scalar_select %p86, %s87, %s88
    %p92 = pneg %p86
    %p93 = scmp.eq.s32.totalorder %s9, 1
    %p94 = por %p92, %p93
    %p95 = scmp.ne.s32.totalorder %s87, %s90
    %p96 = scmp.eq.s32.totalorder %s9, 0
    %p97 = por %p95, %p96
    %p98 = scmp.ne.s32.totalorder %s87, %s90
    %p99 = scmp.eq.s32.totalorder %s14, 1
    %p100 = por %p98, %p99
    %p101 = scmp.ne.s32.totalorder %s90, %s91
    %p102 = scmp.eq.s32.totalorder %s14, 0
    %p103 = por %p101, %p102
    %p104 = scmp.ne.s32.totalorder %s90, %s91
    %p105 = scmp.eq.s32.totalorder %s15, 1
    %p106 = por %p104, %p105
    %p108 = scmp.ne.s32.totalorder %s91, %s107
    %p109 = scmp.eq.s32.totalorder %s15, 0
    %p110 = por %p108, %p109
    %p111 = scmp.le.s32.totalorder 1, %s9
    %p112 = scmp.lt.s32.totalorder %s9, 3
    %p113 = pnand %p111, %p112
    %p114 = pneg %p113
    // Predicated region
    $region9: #{fgcn_forward.4} parent=5 // pred_check
      _
    $region10: #{fgcn_forward.4} parent=5 // pred_check_branch
      %116 = sbr.rel (%p113) target = $region12
    $region11: #{fgcn_forward.4} parent=5 // pred_region
      %s117 = ssub.s32 %s9, 1
      // Predicated region
      $region13: #{fgcn_forward.4} parent=11 // pred_check
        %p118 = pneg %p56
      $region14: #{fgcn_forward.4} parent=11 // pred_check_branch
        %120 = sbr.rel (%p118) target = $region16
      $region15: #{fgcn_forward.4} parent=11 // pred_region
        _
      $region16: #{fgcn_forward.4} parent=11 // pred_fallthru
        _
      // Predicated region
      $region17: #{fgcn_forward.4} parent=11 // pred_check
        %p121 = pneg %p77
      $region18: #{fgcn_forward.4} parent=11 // pred_check_branch
        %123 = sbr.rel (%p121) target = $region20
      $region19: #{fgcn_forward.4} parent=11 // pred_region
        _
      $region20: #{fgcn_forward.4} parent=11 // pred_fallthru
        _
    $region12: #{fgcn_forward.4} parent=5 // pred_fallthru
      _
    %p124 = scmp.lt.s32.totalorder %s9, 2
    // Predicated region
    $region21: #{fgcn_forward.4} parent=5 // pred_check
      %p125 = pneg %p124
    $region22: #{fgcn_forward.4} parent=5 // pred_check_branch
      %127 = sbr.rel (%p125) target = $region24
    $region23: #{fgcn_forward.4} parent=5 // pred_region
      // Predicated region
      $region25: #{fgcn_forward.4} parent=23 // pred_check
        %p128 = pneg %p29
      $region26: #{fgcn_forward.4} parent=23 // pred_check_branch
        %130 = sbr.rel (%p128) target = $region28
      $region27: #{fgcn_forward.4} parent=23 // pred_region
        %s131 = smul.u32 16, %s9
        %p132 = scmp.lt.s32.totalorder %s131, 31
        %s133 = scalar_select %p132, %s131, 31
        %s134 = smul.addr %s133, 8
        %s135 = scalar_lea.vmem %s0, %s134
        %s136 = smul.u32 16, %s9
      $region28: #{fgcn_forward.4} parent=23 // pred_fallthru
        _
    $region24: #{fgcn_forward.4} parent=5 // pred_fallthru
      _
    %p137 = scmp.le.s32.totalorder 1, %s9
    %p138 = scmp.lt.s32.totalorder %s9, 3
    %p139 = pnand %p137, %p138
    %p140 = pneg %p139
    // Predicated region
    $region29: #{fgcn_forward.4} parent=5 // pred_check
      _
    $region30: #{fgcn_forward.4} parent=5 // pred_check_branch
      %142 = sbr.rel (%p139) target = $region32
    $region31: #{fgcn_forward.4} parent=5 // pred_region
      %s143 = ssub.s32 %s9, 1
      %s144 = smul.u32 16, %s14
      %p145 = scmp.lt.s32.totalorder %s144, 31
      %s146 = scalar_select %p145, %s144, 31
      %s147 = smul.addr %s146, 8
      %s148 = scalar_lea.vmem %s0, %s147
      %p149 = pneg %p35
      %p150 = pneg %p32
      %p151 = pneg %p56
      %p152 = pneg %p53
      %p153 = pneg %p77
      %p154 = pneg %p74
      %p155 = pneg %p103
      %p156 = pneg %p100
      %s157 = smul.u32 16, %s14
      %p158 = scmp.lt.s32.totalorder %s157, 31
      %s159 = scalar_select %p158, %s157, 31
      %s160 = smul.addr %s159, 8
      %s161 = scalar_lea.vmem %s3, %s160
      %s162 = smul.u32 16, %s14
      %p163 = scmp.lt.s32.totalorder %s162, 31
      %s164 = scalar_select %p163, %s162, 31
      %s165 = smul.addr %s164, 8
      %s166 = scalar_lea.vmem %s0, %s165
      %s167 = smul.u32 16, %s14
      %s168 = smul.u32 16, %s14
      %p169 = scmp.lt.s32.totalorder %s168, 31
      %s170 = scalar_select %p169, %s168, 31
      %s171 = smul.addr %s170, 8
      %s172 = scalar_lea.vmem %s3, %s171
      %s173 = smul.u32 16, %s14
      %v175 = vld [vmem:[%s166] sm:$0xff]
      %v176 = vld [vmem:[%s166 + $0x8] sm:$0xff]
      %v177 = vld [vmem:[%s166 + $0x10] sm:$0xff]
      %v178 = vld [vmem:[%s166 + $0x18] sm:$0xff]
      %v179 = vld [vmem:[%s166 + $0x20] sm:$0xff]
      %v180 = vld [vmem:[%s166 + $0x28] sm:$0xff]
      %v181 = vld [vmem:[%s166 + $0x30] sm:$0xff]
      %v182 = vld [vmem:[%s166 + $0x38] sm:$0xff]
      %v183 = vld [vmem:[%s166 + $0x40] sm:$0xff]
      %v184 = vld [vmem:[%s166 + $0x48] sm:$0xff]
      %v185 = vld [vmem:[%s166 + $0x50] sm:$0xff]
      %v186 = vld [vmem:[%s166 + $0x58] sm:$0xff]
      %v187 = vld [vmem:[%s166 + $0x60] sm:$0xff]
      %v188 = vld [vmem:[%s166 + $0x68] sm:$0xff]
      %v189 = vld [vmem:[%s166 + $0x70] sm:$0xff]
      %v190 = vld [vmem:[%s166 + $0x78] sm:$0xff]
      %v191 = vpack.c.bf16 %v176, %v175
      %v192 = vpack.c.bf16 %v178, %v177
      %v193 = vpack.c.bf16 %v180, %v179
      %v194 = vpack.c.bf16 %v182, %v181
      %v195 = vpack.c.bf16 %v184, %v183
      %v196 = vpack.c.bf16 %v186, %v185
      %v197 = vpack.c.bf16 %v188, %v187
      %v198 = vpack.c.bf16 %v190, %v189
      %v199 = vld [vmem:[%s1] sm:$0xf]
      %v200 = vld [vmem:[%s1 + $0x4] sm:$0xf]
      %v201 = vld [vmem:[%s1 + $0x8] sm:$0xf]
      %v202 = vld [vmem:[%s1 + $0xc] sm:$0xf]
      %v203 = vld [vmem:[%s1 + $0x10] sm:$0xf]
      %v204 = vld [vmem:[%s1 + $0x14] sm:$0xf]
      %v205 = vld [vmem:[%s1 + $0x18] sm:$0xf]
      %v206 = vld [vmem:[%s1 + $0x1c] sm:$0xf]
      %v207 = vld [vmem:[%s2] sm:$0x1]
      %v209 = vperm.slane %v207, 0
      %v219 = vunpack.c.l.b16 %v199
      %v220 = vunpack.c.l.b16 %v200
      %v221 = vunpack.c.l.b16 %v201
      %v222 = vunpack.c.l.b16 %v202
      %v223 = vunpack.c.l.b16 %v203
      %v224 = vunpack.c.l.b16 %v204
      %v225 = vunpack.c.l.b16 %v205
      %v226 = vunpack.c.l.b16 %v206
      %v227 = vpack.c.b16 %v220, %v219
      %v228 = vpack.c.b16 %v222, %v221
      %v229 = vpack.c.b16 %v224, %v223
      %v230 = vpack.c.b16 %v226, %v225
      %vm235 = vcmask 523264
      %v237 = vsel %vm235, %v191, 0
      %v240 = vsel %vm235, %v192, 0
      %v243 = vsel %vm235, %v193, 0
      %v246 = vsel %vm235, %v194, 0
      %v249 = vsel %vm235, %v195, 0
      %v252 = vsel %vm235, %v196, 0
      %v255 = vsel %vm235, %v197, 0
      %v258 = vsel %vm235, %v198, 0
      %260 = vmatpush.bf16.msra.mxu0 0
      %261 = vmatpush.bf16.msra.mxu0 0
      %262 = vmatpush.bf16.msra.mxu0 0
      %263 = vmatpush.bf16.msra.mxu0 0
      %264 = vmatpush.bf16.msra.mxu0 %v230
      %265 = vmatpush.bf16.msra.mxu0 %v229
      %266 = vmatpush.bf16.msra.mxu0 %v228
      %267 = vmatpush.bf16.msra.mxu0 %v227
      %268 = vmatmul.bf16.gmra.mxu0 %v237
      %v269 = vpop.f32.mrf.mxu0
      %v270 = vadd.f32 %v209, %v269
      %v271 = vpop.f32.mrf.mxu0
      %v272 = vadd.f32 %v209, %v271
      %273 = vmatmul.bf16.gmra.mxu0 %v240
      %v274 = vpop.f32.mrf.mxu0
      %v275 = vadd.f32 %v209, %v274
      %v276 = vpop.f32.mrf.mxu0
      %v277 = vadd.f32 %v209, %v276
      %278 = vmatmul.bf16.gmra.mxu0 %v243
      %v279 = vpop.f32.mrf.mxu0
      %v280 = vadd.f32 %v209, %v279
      %v281 = vpop.f32.mrf.mxu0
      %v282 = vadd.f32 %v209, %v281
      %283 = vmatmul.bf16.gmra.mxu0 %v246
      %v284 = vpop.f32.mrf.mxu0
      %v285 = vadd.f32 %v209, %v284
      %v286 = vpop.f32.mrf.mxu0
      %v287 = vadd.f32 %v209, %v286
      %288 = vmatmul.bf16.gmra.mxu0 %v249
      %v289 = vpop.f32.mrf.mxu0
      %v290 = vadd.f32 %v209, %v289
      %v291 = vpop.f32.mrf.mxu0
      %v292 = vadd.f32 %v209, %v291
      %293 = vmatmul.bf16.gmra.mxu0 %v252
      %v294 = vpop.f32.mrf.mxu0
      %v295 = vadd.f32 %v209, %v294
      %v296 = vpop.f32.mrf.mxu0
      %v297 = vadd.f32 %v209, %v296
      %298 = vmatmul.bf16.gmra.mxu0 %v255
      %v299 = vpop.f32.mrf.mxu0
      %v300 = vadd.f32 %v209, %v299
      %v301 = vpop.f32.mrf.mxu0
      %v302 = vadd.f32 %v209, %v301
      %303 = vmatmul.bf16.gmra.mxu0 %v258
      %v304 = vpop.f32.mrf.mxu0
      %v305 = vadd.f32 %v209, %v304
      %v306 = vpop.f32.mrf.mxu0
      %v307 = vadd.f32 %v209, %v306
      %308 = vdwg.mxu0
      %v309 = vmax.f32 %v270, 0.0
      %v310 = vmax.f32 %v272, 0.0
      %v311 = vmax.f32 %v275, 0.0
      %v312 = vmax.f32 %v277, 0.0
      %v313 = vmax.f32 %v280, 0.0
      %v314 = vmax.f32 %v282, 0.0
      %v315 = vmax.f32 %v285, 0.0
      %v316 = vmax.f32 %v287, 0.0
      %v317 = vmax.f32 %v290, 0.0
      %v318 = vmax.f32 %v292, 0.0
      %v319 = vmax.f32 %v295, 0.0
      %v320 = vmax.f32 %v297, 0.0
      %v321 = vmax.f32 %v300, 0.0
      %v322 = vmax.f32 %v302, 0.0
      %v323 = vmax.f32 %v305, 0.0
      %v324 = vmax.f32 %v307, 0.0
      %325 = vst [vmem:[%s172] sm:$0xff] %v309
      %326 = vst [vmem:[%s172 + $0x8] sm:$0xff] %v310
      %327 = vst [vmem:[%s172 + $0x10] sm:$0xff] %v311
      %328 = vst [vmem:[%s172 + $0x18] sm:$0xff] %v312
      %329 = vst [vmem:[%s172 + $0x20] sm:$0xff] %v313
      %330 = vst [vmem:[%s172 + $0x28] sm:$0xff] %v314
      %331 = vst [vmem:[%s172 + $0x30] sm:$0xff] %v315
      %332 = vst [vmem:[%s172 + $0x38] sm:$0xff] %v316
      %333 = vst [vmem:[%s172 + $0x40] sm:$0xff] %v317
      %334 = vst [vmem:[%s172 + $0x48] sm:$0xff] %v318
      %335 = vst [vmem:[%s172 + $0x50] sm:$0xff] %v319
      %336 = vst [vmem:[%s172 + $0x58] sm:$0xff] %v320
      %337 = vst [vmem:[%s172 + $0x60] sm:$0xff] %v321
      %338 = vst [vmem:[%s172 + $0x68] sm:$0xff] %v322
      %339 = vst [vmem:[%s172 + $0x70] sm:$0xff] %v323
      %340 = vst [vmem:[%s172 + $0x78] sm:$0xff] %v324
      %s341 = smul.u32 16, %s14
      %p342 = scmp.lt.s32.totalorder %s341, 31
      %s343 = scalar_select %p342, %s341, 31
      %s344 = smul.addr %s343, 8
      %s345 = scalar_lea.vmem %s3, %s344
      // Predicated region
      $region33: #{fgcn_forward.4} parent=31 // pred_check
        %p346 = pneg %p100
      $region34: #{fgcn_forward.4} parent=31 // pred_check_branch
        %348 = sbr.rel (%p346) target = $region36
      $region35: #{fgcn_forward.4} parent=31 // pred_region
        %s349 = smul.u32 16, %s14
      $region36: #{fgcn_forward.4} parent=31 // pred_fallthru
        _
    $region32: #{fgcn_forward.4} parent=5 // pred_fallthru
      _
    %p350 = scmp.le.s32.totalorder 2, %s9
    // Predicated region
    $region37: #{fgcn_forward.4} parent=5 // pred_check
      %p351 = pneg %p350
    $region38: #{fgcn_forward.4} parent=5 // pred_check_branch
      %353 = sbr.rel (%p351) target = $region40
    $region39: #{fgcn_forward.4} parent=5 // pred_region
      %s354 = ssub.s32 %s9, 2
      // Predicated region
      $region41: #{fgcn_forward.4} parent=39 // pred_check
        %p355 = pneg %p106
      $region42: #{fgcn_forward.4} parent=39 // pred_check_branch
        %357 = sbr.rel (%p355) target = $region44
      $region43: #{fgcn_forward.4} parent=39 // pred_region
        %s358 = smul.u32 16, %s15
        %p359 = scmp.lt.s32.totalorder %s358, 31
        %s360 = scalar_select %p359, %s358, 31
        %s361 = smul.addr %s360, 8
        %s362 = scalar_lea.vmem %s3, %s361
      $region44: #{fgcn_forward.4} parent=39 // pred_fallthru
        _
    $region40: #{fgcn_forward.4} parent=5 // pred_fallthru
      _
  $region6: #{fgcn_forward.4} parent=0 // loop_footer
    %s13 = sadd.s32 1, %s9
  $region7: #{fgcn_forward.4} parent=0 // loop_footer_branch
    %8 = sbr.rel target = $region3
  $region8: #{fgcn_forward.4} parent=0 // loop_exit
    _

// kernel: fgcn_forward.7
$region0: #{fgcn_forward.7}
  #allocation0 [shape = 'u32[]', space=smem, size = 0x4, offset = 0x4, fixed_abs, tag = 'smem constant byte address 0x4 - core index']
  #allocation1 [shape = 'u32[72,128]{1,0:T(1,128)}', space=vmem, size = 0x9000, scoped, tag = 'internal scratch']
  %s0 = inlined_call_operand.vmem [shape: f32[256,128], index: 0, kind: input, shape index: {}]
  %s1 = inlined_call_operand.vmem [shape: bf16[128,32], index: 1, kind: input, shape index: {}]
  %s2 = inlined_call_operand.vmem [shape: f32[1,32], index: 2, kind: input, shape index: {}]
  %s3 = inlined_call_operand.vmem [shape: f32[256,32], index: 3, kind: output, shape index: {}]
  %s4 = sld [smem:[#allocation0]]
  $region45: #{fgcn_forward.7} parent=0
    _
  %s6 = ssub.s32 1, %s4
  %s7 = scalar_select 0, %s6, %s4
  loop: start=0, step=1, limit=4
  $region2: #{fgcn_forward.7} parent=0 // loop_pre_header
    _
  $region3: #{fgcn_forward.7} parent=0 // loop_header
    %s9 = sphi 0, %s13
    %p10 = scmp.ge.s32.totalorder %s9, 4
    %s19 = sphi 0, %s21
    %s22 = sphi 0, %s19
    %s23 = sphi 0, %s22
    %s39 = sphi 0, %s23
    %s43 = sphi 0, %s43
    %s45 = sphi 0, %s43
    %s46 = sphi 0, %s45
    %s60 = sphi 0, %s46
    %s64 = sphi 0, %s64
    %s66 = sphi 0, %s64
    %s67 = sphi 0, %s66
    %s81 = sphi 0, %s67
    %s87 = sphi 0, %s89
    %s90 = sphi 0, %s87
    %s91 = sphi 0, %s90
    %s107 = sphi 0, %s91
  $region4: #{fgcn_forward.7} parent=0 // loop_header_branch
    %12 = sbr.rel (%p10) target = $region8
  $region5: #{fgcn_forward.7} parent=0 // loop_body
    %s14 = ssub.s32 %s9, 1
    %s15 = ssub.s32 %s9, 2
    %s16 = sadd.s32 %s9, 1
    %s17 = ssub.s32 %s9, %s16
    %p18 = scmp.eq.s32.totalorder %s17, 0
    %s20 = sadd.s32 %s19, 1
    %s21 = scalar_select %p18, %s19, %s20
    %p24 = pneg %p18
    %p25 = scmp.eq.s32.totalorder %s9, 1
    %p26 = por %p24, %p25
    %p27 = scmp.ne.s32.totalorder %s19, %s22
    %p28 = scmp.eq.s32.totalorder %s9, 0
    %p29 = por %p27, %p28
    %p30 = scmp.ne.s32.totalorder %s19, %s22
    %p31 = scmp.eq.s32.totalorder %s14, 1
    %p32 = por %p30, %p31
    %p33 = scmp.ne.s32.totalorder %s22, %s23
    %p34 = scmp.eq.s32.totalorder %s14, 0
    %p35 = por %p33, %p34
    %p36 = scmp.ne.s32.totalorder %s22, %s23
    %p37 = scmp.eq.s32.totalorder %s15, 1
    %p38 = por %p36, %p37
    %p40 = scmp.ne.s32.totalorder %s23, %s39
    %p41 = scmp.eq.s32.totalorder %s15, 0
    %p42 = por %p40, %p41
    %s44 = sadd.s32 %s43, 1
    %p47 = scmp.eq.s32.totalorder %s9, 1
    %p48 = scmp.ne.s32.totalorder %s43, %s45
    %p49 = scmp.eq.s32.totalorder %s9, 0
    %p50 = por %p48, %p49
    %p51 = scmp.ne.s32.totalorder %s43, %s45
    %p52 = scmp.eq.s32.totalorder %s14, 1
    %p53 = por %p51, %p52
    %p54 = scmp.ne.s32.totalorder %s45, %s46
    %p55 = scmp.eq.s32.totalorder %s14, 0
    %p56 = por %p54, %p55
    %p57 = scmp.ne.s32.totalorder %s45, %s46
    %p58 = scmp.eq.s32.totalorder %s15, 1
    %p59 = por %p57, %p58
    %p61 = scmp.ne.s32.totalorder %s46, %s60
    %p62 = scmp.eq.s32.totalorder %s15, 0
    %p63 = por %p61, %p62
    %s65 = sadd.s32 %s64, 1
    %p68 = scmp.eq.s32.totalorder %s9, 1
    %p69 = scmp.ne.s32.totalorder %s64, %s66
    %p70 = scmp.eq.s32.totalorder %s9, 0
    %p71 = por %p69, %p70
    %p72 = scmp.ne.s32.totalorder %s64, %s66
    %p73 = scmp.eq.s32.totalorder %s14, 1
    %p74 = por %p72, %p73
    %p75 = scmp.ne.s32.totalorder %s66, %s67
    %p76 = scmp.eq.s32.totalorder %s14, 0
    %p77 = por %p75, %p76
    %p78 = scmp.ne.s32.totalorder %s66, %s67
    %p79 = scmp.eq.s32.totalorder %s15, 1
    %p80 = por %p78, %p79
    %p82 = scmp.ne.s32.totalorder %s67, %s81
    %p83 = scmp.eq.s32.totalorder %s15, 0
    %p84 = por %p82, %p83
    %s85 = ssub.s32 %s9, %s16
    %p86 = scmp.eq.s32.totalorder %s85, 0
    %s88 = sadd.s32 %s87, 1
    %s89 = scalar_select %p86, %s87, %s88
    %p92 = pneg %p86
    %p93 = scmp.eq.s32.totalorder %s9, 1
    %p94 = por %p92, %p93
    %p95 = scmp.ne.s32.totalorder %s87, %s90
    %p96 = scmp.eq.s32.totalorder %s9, 0
    %p97 = por %p95, %p96
    %p98 = scmp.ne.s32.totalorder %s87, %s90
    %p99 = scmp.eq.s32.totalorder %s14, 1
    %p100 = por %p98, %p99
    %p101 = scmp.ne.s32.totalorder %s90, %s91
    %p102 = scmp.eq.s32.totalorder %s14, 0
    %p103 = por %p101, %p102
    %p104 = scmp.ne.s32.totalorder %s90, %s91
    %p105 = scmp.eq.s32.totalorder %s15, 1
    %p106 = por %p104, %p105
    %p108 = scmp.ne.s32.totalorder %s91, %s107
    %p109 = scmp.eq.s32.totalorder %s15, 0
    %p110 = por %p108, %p109
    %p111 = scmp.le.s32.totalorder 1, %s9
    %p112 = scmp.lt.s32.totalorder %s9, 3
    %p113 = pnand %p111, %p112
    %p114 = pneg %p113
    // Predicated region
    $region9: #{fgcn_forward.7} parent=5 // pred_check
      _
    $region10: #{fgcn_forward.7} parent=5 // pred_check_branch
      %116 = sbr.rel (%p113) target = $region12
    $region11: #{fgcn_forward.7} parent=5 // pred_region
      %s117 = ssub.s32 %s9, 1
      // Predicated region
      $region13: #{fgcn_forward.7} parent=11 // pred_check
        %p118 = pneg %p56
      $region14: #{fgcn_forward.7} parent=11 // pred_check_branch
        %120 = sbr.rel (%p118) target = $region16
      $region15: #{fgcn_forward.7} parent=11 // pred_region
        _
      $region16: #{fgcn_forward.7} parent=11 // pred_fallthru
        _
      // Predicated region
      $region17: #{fgcn_forward.7} parent=11 // pred_check
        %p121 = pneg %p77
      $region18: #{fgcn_forward.7} parent=11 // pred_check_branch
        %123 = sbr.rel (%p121) target = $region20
      $region19: #{fgcn_forward.7} parent=11 // pred_region
        _
      $region20: #{fgcn_forward.7} parent=11 // pred_fallthru
        _
    $region12: #{fgcn_forward.7} parent=5 // pred_fallthru
      _
    %p124 = scmp.lt.s32.totalorder %s9, 2
    // Predicated region
    $region21: #{fgcn_forward.7} parent=5 // pred_check
      %p125 = pneg %p124
    $region22: #{fgcn_forward.7} parent=5 // pred_check_branch
      %127 = sbr.rel (%p125) target = $region24
    $region23: #{fgcn_forward.7} parent=5 // pred_region
      // Predicated region
      $region25: #{fgcn_forward.7} parent=23 // pred_check
        %p128 = pneg %p29
      $region26: #{fgcn_forward.7} parent=23 // pred_check_branch
        %130 = sbr.rel (%p128) target = $region28
      $region27: #{fgcn_forward.7} parent=23 // pred_region
        %s131 = smul.u32 16, %s9
        %p132 = scmp.lt.s32.totalorder %s131, 31
        %s133 = scalar_select %p132, %s131, 31
        %s134 = smul.addr %s133, 8
        %s135 = scalar_lea.vmem %s0, %s134
        %s136 = smul.u32 16, %s9
      $region28: #{fgcn_forward.7} parent=23 // pred_fallthru
        _
    $region24: #{fgcn_forward.7} parent=5 // pred_fallthru
      _
    %p137 = scmp.le.s32.totalorder 1, %s9
    %p138 = scmp.lt.s32.totalorder %s9, 3
    %p139 = pnand %p137, %p138
    %p140 = pneg %p139
    // Predicated region
    $region29: #{fgcn_forward.7} parent=5 // pred_check
      _
    $region30: #{fgcn_forward.7} parent=5 // pred_check_branch
      %142 = sbr.rel (%p139) target = $region32
    $region31: #{fgcn_forward.7} parent=5 // pred_region
      %s143 = ssub.s32 %s9, 1
      %s144 = smul.u32 16, %s14
      %p145 = scmp.lt.s32.totalorder %s144, 31
      %s146 = scalar_select %p145, %s144, 31
      %s147 = smul.addr %s146, 8
      %s148 = scalar_lea.vmem %s0, %s147
      %p149 = pneg %p35
      %p150 = pneg %p32
      %p151 = pneg %p56
      %p152 = pneg %p53
      %p153 = pneg %p77
      %p154 = pneg %p74
      %p155 = pneg %p103
      %p156 = pneg %p100
      %s157 = smul.u32 16, %s14
      %p158 = scmp.lt.s32.totalorder %s157, 31
      %s159 = scalar_select %p158, %s157, 31
      %s160 = smul.addr %s159, 8
      %s161 = scalar_lea.vmem %s3, %s160
      %s162 = smul.u32 16, %s14
      %p163 = scmp.lt.s32.totalorder %s162, 31
      %s164 = scalar_select %p163, %s162, 31
      %s165 = smul.addr %s164, 8
      %s166 = scalar_lea.vmem %s0, %s165
      %s167 = smul.u32 16, %s14
      %s168 = smul.u32 16, %s14
      %p169 = scmp.lt.s32.totalorder %s168, 31
      %s170 = scalar_select %p169, %s168, 31
      %s171 = smul.addr %s170, 8
      %s172 = scalar_lea.vmem %s3, %s171
      %s173 = smul.u32 16, %s14
      %v174 = vld [vmem:[%s166] sm:$0xff]
      %v175 = vld [vmem:[%s166 + $0x8] sm:$0xff]
      %v176 = vld [vmem:[%s166 + $0x10] sm:$0xff]
      %v177 = vld [vmem:[%s166 + $0x18] sm:$0xff]
      %v178 = vld [vmem:[%s166 + $0x20] sm:$0xff]
      %v179 = vld [vmem:[%s166 + $0x28] sm:$0xff]
      %v180 = vld [vmem:[%s166 + $0x30] sm:$0xff]
      %v181 = vld [vmem:[%s166 + $0x38] sm:$0xff]
      %v182 = vld [vmem:[%s166 + $0x40] sm:$0xff]
      %v183 = vld [vmem:[%s166 + $0x48] sm:$0xff]
      %v184 = vld [vmem:[%s166 + $0x50] sm:$0xff]
      %v185 = vld [vmem:[%s166 + $0x58] sm:$0xff]
      %v186 = vld [vmem:[%s166 + $0x60] sm:$0xff]
      %v187 = vld [vmem:[%s166 + $0x68] sm:$0xff]
      %v188 = vld [vmem:[%s166 + $0x70] sm:$0xff]
      %v189 = vld [vmem:[%s166 + $0x78] sm:$0xff]
      %v190 = vpack.c.bf16 %v175, %v174
      %v191 = vpack.c.bf16 %v177, %v176
      %v192 = vpack.c.bf16 %v179, %v178
      %v193 = vpack.c.bf16 %v181, %v180
      %v194 = vpack.c.bf16 %v183, %v182
      %v195 = vpack.c.bf16 %v185, %v184
      %v196 = vpack.c.bf16 %v187, %v186
      %v197 = vpack.c.bf16 %v189, %v188
      %v198 = vld [vmem:[%s1] sm:$0xf]
      %v199 = vld [vmem:[%s1 + $0x4] sm:$0xf]
      %v200 = vld [vmem:[%s1 + $0x8] sm:$0xf]
      %v201 = vld [vmem:[%s1 + $0xc] sm:$0xf]
      %v202 = vld [vmem:[%s1 + $0x10] sm:$0xf]
      %v203 = vld [vmem:[%s1 + $0x14] sm:$0xf]
      %v204 = vld [vmem:[%s1 + $0x18] sm:$0xf]
      %v205 = vld [vmem:[%s1 + $0x1c] sm:$0xf]
      %v206 = vld [vmem:[%s1 + $0x20] sm:$0xf]
      %v207 = vld [vmem:[%s1 + $0x24] sm:$0xf]
      %v208 = vld [vmem:[%s1 + $0x28] sm:$0xf]
      %v209 = vld [vmem:[%s1 + $0x2c] sm:$0xf]
      %v210 = vld [vmem:[%s1 + $0x30] sm:$0xf]
      %v211 = vld [vmem:[%s1 + $0x34] sm:$0xf]
      %v212 = vld [vmem:[%s1 + $0x38] sm:$0xf]
      %v213 = vld [vmem:[%s1 + $0x3c] sm:$0xf]
      %v214 = vld [vmem:[%s2] sm:$0x1]
      %v216 = vperm.slane %v214, 0
      %v234 = vunpack.c.l.b16 %v198
      %v235 = vunpack.c.l.b16 %v199
      %v236 = vunpack.c.l.b16 %v200
      %v237 = vunpack.c.l.b16 %v201
      %v238 = vunpack.c.l.b16 %v202
      %v239 = vunpack.c.l.b16 %v203
      %v240 = vunpack.c.l.b16 %v204
      %v241 = vunpack.c.l.b16 %v205
      %v242 = vunpack.c.l.b16 %v206
      %v243 = vunpack.c.l.b16 %v207
      %v244 = vunpack.c.l.b16 %v208
      %v245 = vunpack.c.l.b16 %v209
      %v246 = vunpack.c.l.b16 %v210
      %v247 = vunpack.c.l.b16 %v211
      %v248 = vunpack.c.l.b16 %v212
      %v249 = vunpack.c.l.b16 %v213
      %v250 = vpack.c.b16 %v235, %v234
      %v251 = vpack.c.b16 %v237, %v236
      %v252 = vpack.c.b16 %v239, %v238
      %v253 = vpack.c.b16 %v241, %v240
      %v254 = vpack.c.b16 %v243, %v242
      %v255 = vpack.c.b16 %v245, %v244
      %v256 = vpack.c.b16 %v247, %v246
      %v257 = vpack.c.b16 %v249, %v248
      %266 = vmatpush.bf16.msra.mxu0 %v257
      %267 = vmatpush.bf16.msra.mxu0 %v256
      %268 = vmatpush.bf16.msra.mxu0 %v255
      %269 = vmatpush.bf16.msra.mxu0 %v254
      %270 = vmatpush.bf16.msra.mxu0 %v253
      %271 = vmatpush.bf16.msra.mxu0 %v252
      %272 = vmatpush.bf16.msra.mxu0 %v251
      %273 = vmatpush.bf16.msra.mxu0 %v250
      %274 = vmatmul.bf16.gmra.mxu0 %v190
      %v275 = vpop.f32.mrf.mxu0
      %v276 = vadd.f32 %v216, %v275
      %v277 = vpop.f32.mrf.mxu0
      %v278 = vadd.f32 %v216, %v277
      %279 = vmatmul.bf16.gmra.mxu0 %v191
      %v280 = vpop.f32.mrf.mxu0
      %v281 = vadd.f32 %v216, %v280
      %v282 = vpop.f32.mrf.mxu0
      %v283 = vadd.f32 %v216, %v282
      %284 = vmatmul.bf16.gmra.mxu0 %v192
      %v285 = vpop.f32.mrf.mxu0
      %v286 = vadd.f32 %v216, %v285
      %v287 = vpop.f32.mrf.mxu0
      %v288 = vadd.f32 %v216, %v287
      %289 = vmatmul.bf16.gmra.mxu0 %v193
      %v290 = vpop.f32.mrf.mxu0
      %v291 = vadd.f32 %v216, %v290
      %v292 = vpop.f32.mrf.mxu0
      %v293 = vadd.f32 %v216, %v292
      %294 = vmatmul.bf16.gmra.mxu0 %v194
      %v295 = vpop.f32.mrf.mxu0
      %v296 = vadd.f32 %v216, %v295
      %v297 = vpop.f32.mrf.mxu0
      %v298 = vadd.f32 %v216, %v297
      %299 = vmatmul.bf16.gmra.mxu0 %v195
      %v300 = vpop.f32.mrf.mxu0
      %v301 = vadd.f32 %v216, %v300
      %v302 = vpop.f32.mrf.mxu0
      %v303 = vadd.f32 %v216, %v302
      %304 = vmatmul.bf16.gmra.mxu0 %v196
      %v305 = vpop.f32.mrf.mxu0
      %v306 = vadd.f32 %v216, %v305
      %v307 = vpop.f32.mrf.mxu0
      %v308 = vadd.f32 %v216, %v307
      %309 = vmatmul.bf16.gmra.mxu0 %v197
      %v310 = vpop.f32.mrf.mxu0
      %v311 = vadd.f32 %v216, %v310
      %v312 = vpop.f32.mrf.mxu0
      %v313 = vadd.f32 %v216, %v312
      %314 = vdwg.mxu0
      %vm315 = vcmask 261120
      %316 = vst.msk [vmem:[%s172] sm:$0xff] %vm315, %v276
      %317 = vst.msk [vmem:[%s172 + $0x8] sm:$0xff] %vm315, %v278
      %318 = vst.msk [vmem:[%s172 + $0x10] sm:$0xff] %vm315, %v281
      %319 = vst.msk [vmem:[%s172 + $0x18] sm:$0xff] %vm315, %v283
      %320 = vst.msk [vmem:[%s172 + $0x20] sm:$0xff] %vm315, %v286
      %321 = vst.msk [vmem:[%s172 + $0x28] sm:$0xff] %vm315, %v288
      %322 = vst.msk [vmem:[%s172 + $0x30] sm:$0xff] %vm315, %v291
      %323 = vst.msk [vmem:[%s172 + $0x38] sm:$0xff] %vm315, %v293
      %324 = vst.msk [vmem:[%s172 + $0x40] sm:$0xff] %vm315, %v296
      %325 = vst.msk [vmem:[%s172 + $0x48] sm:$0xff] %vm315, %v298
      %326 = vst.msk [vmem:[%s172 + $0x50] sm:$0xff] %vm315, %v301
      %327 = vst.msk [vmem:[%s172 + $0x58] sm:$0xff] %vm315, %v303
      %328 = vst.msk [vmem:[%s172 + $0x60] sm:$0xff] %vm315, %v306
      %329 = vst.msk [vmem:[%s172 + $0x68] sm:$0xff] %vm315, %v308
      %330 = vst.msk [vmem:[%s172 + $0x70] sm:$0xff] %vm315, %v311
      %331 = vst.msk [vmem:[%s172 + $0x78] sm:$0xff] %vm315, %v313
      %s332 = smul.u32 16, %s14
      %p333 = scmp.lt.s32.totalorder %s332, 31
      %s334 = scalar_select %p333, %s332, 31
      %s335 = smul.addr %s334, 8
      %s336 = scalar_lea.vmem %s3, %s335
      // Predicated region
      $region33: #{fgcn_forward.7} parent=31 // pred_check
        %p337 = pneg %p100
      $region34: #{fgcn_forward.7} parent=31 // pred_check_branch
        %339 = sbr.rel (%p337) target = $region36
      $region35: #{fgcn_forward.7} parent=31 // pred_region
        %s340 = smul.u32 16, %s14
      $region36: #{fgcn_forward.7} parent=31 // pred_fallthru
        _
    $region32: #{fgcn_forward.7} parent=5 // pred_fallthru
      _
    %p341 = scmp.le.s32.totalorder 2, %s9
    // Predicated region
    $region37: #{fgcn_forward.7} parent=5 // pred_check
      %p342 = pneg %p341
    $region38: #{fgcn_forward.7} parent=5 // pred_check_branch
      %344 = sbr.rel (%p342) target = $region40
    $region39: #{fgcn_forward.7} parent=5 // pred_region
      %s345 = ssub.s32 %s9, 2
      // Predicated region
      $region41: #{fgcn_forward.7} parent=39 // pred_check
        %p346 = pneg %p106
      $region42: #{fgcn_forward.7} parent=39 // pred_check_branch
        %348 = sbr.rel (%p346) target = $region44
      $region43: #{fgcn_forward.7} parent=39 // pred_region
        %s349 = smul.u32 16, %s15
        %p350 = scmp.lt.s32.totalorder %s349, 31
        %s351 = scalar_select %p350, %s349, 31
        %s352 = smul.addr %s351, 8
        %s353 = scalar_lea.vmem %s3, %s352
      $region44: #{fgcn_forward.7} parent=39 // pred_fallthru
        _
    $region40: #{fgcn_forward.7} parent=5 // pred_fallthru
      _
  $region6: #{fgcn_forward.7} parent=0 // loop_footer
    %s13 = sadd.s32 1, %s9
  $region7: #{fgcn_forward.7} parent=0 // loop_footer_branch
    %8 = sbr.rel target = $region3
  $region8: #{fgcn_forward.7} parent=0 // loop_exit
    _

// kernel: fgcn_forward.5
$region0: #{fgcn_forward.5}
  #allocation0 [shape = 'u32[]', space=smem, size = 0x4, offset = 0x4, fixed_abs, tag = 'smem constant byte address 0x4 - core index']
  #allocation1 [shape = 'u32[72,128]{1,0:T(1,128)}', space=vmem, size = 0x9000, scoped, tag = 'internal scratch']
  #allocation2 [shape = 'f32[128,128]{1,0:T(8,128)}', space=vmem, size = 0x10000, scoped, tag = 'scratch operand']
  %s0 = inlined_call_operand.vmem [shape: bf16[256,256], index: 0, kind: input, shape index: {}]
  %s1 = inlined_call_operand.vmem [shape: f32[256,128], index: 1, kind: input, shape index: {}, may-alias: {1,2}]
  %s2 = inlined_call_operand.vmem [shape: f32[256,128], index: 2, kind: input, shape index: {}, may-alias: {1,2}]
  %s3 = inlined_call_operand.vmem [shape: bf16[128,128], index: 3, kind: input, shape index: {}]
  %s4 = inlined_call_operand.vmem [shape: f32[1,128], index: 4, kind: input, shape index: {}]
  %s5 = inlined_call_operand.vmem [shape: bf16[128,128], index: 5, kind: input, shape index: {}]
  %s6 = inlined_call_operand.vmem [shape: f32[1,128], index: 6, kind: input, shape index: {}]
  %s7 = inlined_call_operand.vmem [shape: f32[1,128], index: 7, kind: input, shape index: {}]
  %s8 = inlined_call_operand.vmem [shape: f32[1,128], index: 8, kind: input, shape index: {}]
  %s9 = inlined_call_operand.vmem [shape: f32[256,128], index: 9, kind: output, shape index: {}]
  %s10 = sld [smem:[#allocation0]]
  $region118: #{fgcn_forward.5} parent=0
    _
  %s12 = ssub.s32 1, %s10
  %s13 = scalar_select 0, %s12, %s10
  $region1: #{fgcn_forward.5} parent=0
    #allocation3 [shape = 'u8[65536]{0}', space=vmem, size = 0x10000, scoped, tag = 'input window, operand 0']
    loop: start=0, step=1, limit=6
    $region2: #{fgcn_forward.5} parent=1 // loop_pre_header
      _
    $region3: #{fgcn_forward.5} parent=1 // loop_header
      %s15 = sphi 0, %s19
      %p16 = scmp.ge.s32.totalorder %s15, 6
      %s22 = sphi 0, %s34
      %s23 = sphi 0, %s30
      %s24 = sphi 0, %s22
      %s25 = sphi 0, %s23
      %s26 = sphi 0, %s24
      %s27 = sphi 0, %s25
      %s39 = sphi 0, %s41
      %s42 = sphi 0, %s39
      %s43 = sphi 0, %s42
      %s59 = sphi 0, %s43
      %s65 = sphi 0, %s67
      %s68 = sphi 0, %s65
      %s69 = sphi 0, %s68
      %s85 = sphi 0, %s69
      %s91 = sphi 0, %s93
      %s94 = sphi 0, %s91
      %s95 = sphi 0, %s94
      %s111 = sphi 0, %s95
      %s115 = sphi 0, %s115
      %s117 = sphi 0, %s115
      %s118 = sphi 0, %s117
      %s132 = sphi 0, %s118
      %s136 = sphi 0, %s136
      %s138 = sphi 0, %s136
      %s139 = sphi 0, %s138
      %s153 = sphi 0, %s139
      %s157 = sphi 0, %s157
      %s159 = sphi 0, %s157
      %s160 = sphi 0, %s159
      %s174 = sphi 0, %s160
      %s178 = sphi 0, %s178
      %s180 = sphi 0, %s178
      %s181 = sphi 0, %s180
      %s195 = sphi 0, %s181
      %s199 = sphi 0, %s199
      %s201 = sphi 0, %s199
      %s202 = sphi 0, %s201
      %s216 = sphi 0, %s202
      %s220 = sphi 0, %s220
      %s222 = sphi 0, %s220
      %s223 = sphi 0, %s222
      %s237 = sphi 0, %s223
      %s243 = sphi 0, %s245
      %s246 = sphi 0, %s243
      %s247 = sphi 0, %s246
      %s263 = sphi 0, %s247
    $region4: #{fgcn_forward.5} parent=1 // loop_header_branch
      %18 = sbr.rel (%p16) target = $region8
    $region5: #{fgcn_forward.5} parent=1 // loop_body
      %s20 = ssub.s32 %s15, 1
      %s21 = ssub.s32 %s15, 2
      %s28 = sadd.s32 1, %s23
      %p29 = scmp.ge.s32.totalorder %s28, 2
      %s30 = scalar_select %p29, 0, %s28
      %s31 = sadd.s32 1, %s22
      %s32 = scalar_select %p29, %s31, %s22
      %p33 = scmp.ge.s32.totalorder %s32, 2
      %s34 = scalar_select %p33, 0, %s32
      %s35 = ssub.s32 %s22, %s34
      %s36 = ssub.s32 %s23, %s30
      %s37 = sor.u32 %s35, %s36
      %p38 = scmp.eq.s32.totalorder %s37, 0
      %s40 = sadd.s32 %s39, 1
      %s41 = scalar_select %p38, %s39, %s40
      %p44 = pneg %p38
      %p45 = scmp.eq.s32.totalorder %s15, 3
      %p46 = por %p44, %p45
      %p47 = scmp.ne.s32.totalorder %s39, %s42
      %p48 = scmp.eq.s32.totalorder %s15, 0
      %p49 = por %p47, %p48
      %p50 = scmp.ne.s32.totalorder %s39, %s42
      %p51 = scmp.eq.s32.totalorder %s20, 3
      %p52 = por %p50, %p51
      %p53 = scmp.ne.s32.totalorder %s42, %s43
      %p54 = scmp.eq.s32.totalorder %s20, 0
      %p55 = por %p53, %p54
      %p56 = scmp.ne.s32.totalorder %s42, %s43
      %p57 = scmp.eq.s32.totalorder %s21, 3
      %p58 = por %p56, %p57
      %p60 = scmp.ne.s32.totalorder %s43, %s59
      %p61 = scmp.eq.s32.totalorder %s21, 0
      %p62 = por %p60, %p61
      %s63 = ssub.s32 %s23, %s30
      %p64 = scmp.eq.s32.totalorder %s63, 0
      %s66 = sadd.s32 %s65, 1
      %s67 = scalar_select %p64, %s65, %s66
      %p70 = pneg %p64
      %p71 = scmp.eq.s32.totalorder %s15, 3
      %p72 = por %p70, %p71
      %p73 = scmp.ne.s32.totalorder %s65, %s68
      %p74 = scmp.eq.s32.totalorder %s15, 0
      %p75 = por %p73, %p74
      %p76 = scmp.ne.s32.totalorder %s65, %s68
      %p77 = scmp.eq.s32.totalorder %s20, 3
      %p78 = por %p76, %p77
      %p79 = scmp.ne.s32.totalorder %s68, %s69
      %p80 = scmp.eq.s32.totalorder %s20, 0
      %p81 = por %p79, %p80
      %p82 = scmp.ne.s32.totalorder %s68, %s69
      %p83 = scmp.eq.s32.totalorder %s21, 3
      %p84 = por %p82, %p83
      %p86 = scmp.ne.s32.totalorder %s69, %s85
      %p87 = scmp.eq.s32.totalorder %s21, 0
      %p88 = por %p86, %p87
      %s89 = ssub.s32 %s22, %s34
      %p90 = scmp.eq.s32.totalorder %s89, 0
      %s92 = sadd.s32 %s91, 1
      %s93 = scalar_select %p90, %s91, %s92
      %p96 = pneg %p90
      %p97 = scmp.eq.s32.totalorder %s15, 3
      %p98 = por %p96, %p97
      %p99 = scmp.ne.s32.totalorder %s91, %s94
      %p100 = scmp.eq.s32.totalorder %s15, 0
      %p101 = por %p99, %p100
      %p102 = scmp.ne.s32.totalorder %s91, %s94
      %p103 = scmp.eq.s32.totalorder %s20, 3
      %p104 = por %p102, %p103
      %p105 = scmp.ne.s32.totalorder %s94, %s95
      %p106 = scmp.eq.s32.totalorder %s20, 0
      %p107 = por %p105, %p106
      %p108 = scmp.ne.s32.totalorder %s94, %s95
      %p109 = scmp.eq.s32.totalorder %s21, 3
      %p110 = por %p108, %p109
      %p112 = scmp.ne.s32.totalorder %s95, %s111
      %p113 = scmp.eq.s32.totalorder %s21, 0
      %p114 = por %p112, %p113
      %s116 = sadd.s32 %s115, 1
      %p119 = scmp.eq.s32.totalorder %s15, 3
      %p120 = scmp.ne.s32.totalorder %s115, %s117
      %p121 = scmp.eq.s32.totalorder %s15, 0
      %p122 = por %p120, %p121
      %p123 = scmp.ne.s32.totalorder %s115, %s117
      %p124 = scmp.eq.s32.totalorder %s20, 3
      %p125 = por %p123, %p124
      %p126 = scmp.ne.s32.totalorder %s117, %s118
      %p127 = scmp.eq.s32.totalorder %s20, 0
      %p128 = por %p126, %p127
      %p129 = scmp.ne.s32.totalorder %s117, %s118
      %p130 = scmp.eq.s32.totalorder %s21, 3
      %p131 = por %p129, %p130
      %p133 = scmp.ne.s32.totalorder %s118, %s132
      %p134 = scmp.eq.s32.totalorder %s21, 0
      %p135 = por %p133, %p134
      %s137 = sadd.s32 %s136, 1
      %p140 = scmp.eq.s32.totalorder %s15, 3
      %p141 = scmp.ne.s32.totalorder %s136, %s138
      %p142 = scmp.eq.s32.totalorder %s15, 0
      %p143 = por %p141, %p142
      %p144 = scmp.ne.s32.totalorder %s136, %s138
      %p145 = scmp.eq.s32.totalorder %s20, 3
      %p146 = por %p144, %p145
      %p147 = scmp.ne.s32.totalorder %s138, %s139
      %p148 = scmp.eq.s32.totalorder %s20, 0
      %p149 = por %p147, %p148
      %p150 = scmp.ne.s32.totalorder %s138, %s139
      %p151 = scmp.eq.s32.totalorder %s21, 3
      %p152 = por %p150, %p151
      %p154 = scmp.ne.s32.totalorder %s139, %s153
      %p155 = scmp.eq.s32.totalorder %s21, 0
      %p156 = por %p154, %p155
      %s158 = sadd.s32 %s157, 1
      %p161 = scmp.eq.s32.totalorder %s15, 3
      %p162 = scmp.ne.s32.totalorder %s157, %s159
      %p163 = scmp.eq.s32.totalorder %s15, 0
      %p164 = por %p162, %p163
      %p165 = scmp.ne.s32.totalorder %s157, %s159
      %p166 = scmp.eq.s32.totalorder %s20, 3
      %p167 = por %p165, %p166
      %p168 = scmp.ne.s32.totalorder %s159, %s160
      %p169 = scmp.eq.s32.totalorder %s20, 0
      %p170 = por %p168, %p169
      %p171 = scmp.ne.s32.totalorder %s159, %s160
      %p172 = scmp.eq.s32.totalorder %s21, 3
      %p173 = por %p171, %p172
      %p175 = scmp.ne.s32.totalorder %s160, %s174
      %p176 = scmp.eq.s32.totalorder %s21, 0
      %p177 = por %p175, %p176
      %s179 = sadd.s32 %s178, 1
      %p182 = scmp.eq.s32.totalorder %s15, 3
      %p183 = scmp.ne.s32.totalorder %s178, %s180
      %p184 = scmp.eq.s32.totalorder %s15, 0
      %p185 = por %p183, %p184
      %p186 = scmp.ne.s32.totalorder %s178, %s180
      %p187 = scmp.eq.s32.totalorder %s20, 3
      %p188 = por %p186, %p187
      %p189 = scmp.ne.s32.totalorder %s180, %s181
      %p190 = scmp.eq.s32.totalorder %s20, 0
      %p191 = por %p189, %p190
      %p192 = scmp.ne.s32.totalorder %s180, %s181
      %p193 = scmp.eq.s32.totalorder %s21, 3
      %p194 = por %p192, %p193
      %p196 = scmp.ne.s32.totalorder %s181, %s195
      %p197 = scmp.eq.s32.totalorder %s21, 0
      %p198 = por %p196, %p197
      %s200 = sadd.s32 %s199, 1
      %p203 = scmp.eq.s32.totalorder %s15, 3
      %p204 = scmp.ne.s32.totalorder %s199, %s201
      %p205 = scmp.eq.s32.totalorder %s15, 0
      %p206 = por %p204, %p205
      %p207 = scmp.ne.s32.totalorder %s199, %s201
      %p208 = scmp.eq.s32.totalorder %s20, 3
      %p209 = por %p207, %p208
      %p210 = scmp.ne.s32.totalorder %s201, %s202
      %p211 = scmp.eq.s32.totalorder %s20, 0
      %p212 = por %p210, %p211
      %p213 = scmp.ne.s32.totalorder %s201, %s202
      %p214 = scmp.eq.s32.totalorder %s21, 3
      %p215 = por %p213, %p214
      %p217 = scmp.ne.s32.totalorder %s202, %s216
      %p218 = scmp.eq.s32.totalorder %s21, 0
      %p219 = por %p217, %p218
      %s221 = sadd.s32 %s220, 1
      %p224 = scmp.eq.s32.totalorder %s15, 3
      %p225 = scmp.ne.s32.totalorder %s220, %s222
      %p226 = scmp.eq.s32.totalorder %s15, 0
      %p227 = por %p225, %p226
      %p228 = scmp.ne.s32.totalorder %s220, %s222
      %p229 = scmp.eq.s32.totalorder %s20, 3
      %p230 = por %p228, %p229
      %p231 = scmp.ne.s32.totalorder %s222, %s223
      %p232 = scmp.eq.s32.totalorder %s20, 0
      %p233 = por %p231, %p232
      %p234 = scmp.ne.s32.totalorder %s222, %s223
      %p235 = scmp.eq.s32.totalorder %s21, 3
      %p236 = por %p234, %p235
      %p238 = scmp.ne.s32.totalorder %s223, %s237
      %p239 = scmp.eq.s32.totalorder %s21, 0
      %p240 = por %p238, %p239
      %s241 = ssub.s32 %s22, %s34
      %p242 = scmp.eq.s32.totalorder %s241, 0
      %s244 = sadd.s32 %s243, 1
      %s245 = scalar_select %p242, %s243, %s244
      %p248 = pneg %p242
      %p249 = scmp.eq.s32.totalorder %s15, 3
      %p250 = por %p248, %p249
      %p251 = scmp.ne.s32.totalorder %s243, %s246
      %p252 = scmp.eq.s32.totalorder %s15, 0
      %p253 = por %p251, %p252
      %p254 = scmp.ne.s32.totalorder %s243, %s246
      %p255 = scmp.eq.s32.totalorder %s20, 3
      %p256 = por %p254, %p255
      %p257 = scmp.ne.s32.totalorder %s246, %s247
      %p258 = scmp.eq.s32.totalorder %s20, 0
      %p259 = por %p257, %p258
      %p260 = scmp.ne.s32.totalorder %s246, %s247
      %p261 = scmp.eq.s32.totalorder %s21, 3
      %p262 = por %p260, %p261
      %p264 = scmp.ne.s32.totalorder %s247, %s263
      %p265 = scmp.eq.s32.totalorder %s21, 0
      %p266 = por %p264, %p265
      %p267 = scmp.le.s32.totalorder 1, %s15
      %p268 = scmp.lt.s32.totalorder %s15, 5
      %p269 = pnand %p267, %p268
      %p270 = pneg %p269
      // Predicated region
      $region9: #{fgcn_forward.5} parent=5 // pred_check
        _
      $region10: #{fgcn_forward.5} parent=5 // pred_check_branch
        %272 = sbr.rel (%p269) target = $region12
      $region11: #{fgcn_forward.5} parent=5 // pred_region
        %s273 = ssub.s32 %s15, 1
        // Predicated region
        $region13: #{fgcn_forward.5} parent=11 // pred_check
          %p274 = pneg %p128
        $region14: #{fgcn_forward.5} parent=11 // pred_check_branch
          %276 = sbr.rel (%p274) target = $region16
        $region15: #{fgcn_forward.5} parent=11 // pred_region
          _
        $region16: #{fgcn_forward.5} parent=11 // pred_fallthru
          _
        // Predicated region
        $region17: #{fgcn_forward.5} parent=11 // pred_check
          %p277 = pneg %p149
        $region18: #{fgcn_forward.5} parent=11 // pred_check_branch
          %279 = sbr.rel (%p277) target = $region20
        $region19: #{fgcn_forward.5} parent=11 // pred_region
          _
        $region20: #{fgcn_forward.5} parent=11 // pred_fallthru
          _
        // Predicated region
        $region21: #{fgcn_forward.5} parent=11 // pred_check
          %p280 = pneg %p170
        $region22: #{fgcn_forward.5} parent=11 // pred_check_branch
          %282 = sbr.rel (%p280) target = $region24
        $region23: #{fgcn_forward.5} parent=11 // pred_region
          _
        $region24: #{fgcn_forward.5} parent=11 // pred_fallthru
          _
        // Predicated region
        $region25: #{fgcn_forward.5} parent=11 // pred_check
          %p283 = pneg %p191
        $region26: #{fgcn_forward.5} parent=11 // pred_check_branch
          %285 = sbr.rel (%p283) target = $region28
        $region27: #{fgcn_forward.5} parent=11 // pred_region
          _
        $region28: #{fgcn_forward.5} parent=11 // pred_fallthru
          _
        // Predicated region
        $region29: #{fgcn_forward.5} parent=11 // pred_check
          %p286 = pneg %p212
        $region30: #{fgcn_forward.5} parent=11 // pred_check_branch
          %288 = sbr.rel (%p286) target = $region32
        $region31: #{fgcn_forward.5} parent=11 // pred_region
          _
        $region32: #{fgcn_forward.5} parent=11 // pred_fallthru
          _
        // Predicated region
        $region33: #{fgcn_forward.5} parent=11 // pred_check
          %p289 = pneg %p233
        $region34: #{fgcn_forward.5} parent=11 // pred_check_branch
          %291 = sbr.rel (%p289) target = $region36
        $region35: #{fgcn_forward.5} parent=11 // pred_region
          _
        $region36: #{fgcn_forward.5} parent=11 // pred_fallthru
          _
      $region12: #{fgcn_forward.5} parent=5 // pred_fallthru
        _
      %p292 = scmp.lt.s32.totalorder %s15, 4
      // Predicated region
      $region37: #{fgcn_forward.5} parent=5 // pred_check
        %p293 = pneg %p292
      $region38: #{fgcn_forward.5} parent=5 // pred_check_branch
        %295 = sbr.rel (%p293) target = $region40
      $region39: #{fgcn_forward.5} parent=5 // pred_region
        // Predicated region
        $region41: #{fgcn_forward.5} parent=39 // pred_check
          %p296 = pneg %p49
        $region42: #{fgcn_forward.5} parent=39 // pred_check_branch
          %298 = sbr.rel (%p296) target = $region44
        $region43: #{fgcn_forward.5} parent=39 // pred_region
          %s299 = sand.u32 %s39, 1
          %s300 = sand.u32 %s39, 1
          %s301 = smul.addr %s300, 64
          %s302 = scalar_lea.vmem [#allocation3], %s301
          %s303 = smul.u32 16, %s22
          %s304 = smul.addr %s303, 2
          %s305 = sadd.s32 %s23, %s304
          %s306 = smul.addr %s305, 4
          %s307 = scalar_lea.vmem %s0, %s306
          // Predicated region
          $region45: #{fgcn_forward.5} parent=43 // pred_check
            _
          $region46: #{fgcn_forward.5} parent=43 // pred_check_branch
            %309 = sbr.rel (0) target = $region48
          $region47: #{fgcn_forward.5} parent=43 // pred_region
            // Predicated region
            $region49: #{fgcn_forward.5} parent=47 // pred_check
              _
            $region50: #{fgcn_forward.5} parent=47 // pred_check_branch
              %311 = sbr.rel target = $region52
            $region51: #{fgcn_forward.5} parent=47 // pred_region
              // Predicated region
              $region64: #{fgcn_forward.5} parent=51 // pred_check
                _
              $region65: #{fgcn_forward.5} parent=51 // pred_check_branch
                %357 = sbr.rel (0) target = $region67
              $region66: #{fgcn_forward.5} parent=51 // pred_region
                loop: start=0, step=1, limit=1
                $region68: #{fgcn_forward.5} parent=66 // loop_pre_header
                  _
                $region69: #{fgcn_forward.5} parent=66 // loop_header
                  %s359 = sphi 0, %s363
                  %p360 = scmp.ge.s32.totalorder %s359, 1
                  %s364 = sphi %s307, %s307
                  %s365 = sphi %s302, %s302
                $region70: #{fgcn_forward.5} parent=66 // loop_header_branch
                  %362 = sbr.rel (%p360) target = $region74
                $region71: #{fgcn_forward.5} parent=66 // loop_body
                  _
                $region72: #{fgcn_forward.5} parent=66 // loop_footer
                  %s363 = sadd.s32 1, %s359
                $region73: #{fgcn_forward.5} parent=66 // loop_footer_branch
                  %358 = sbr.rel target = $region69
                $region74: #{fgcn_forward.5} parent=66 // loop_exit
                  _
                %s367 = ssub.s32 16, 1
                loop: start=0, step=1, limit=1
                $region75: #{fgcn_forward.5} parent=66 // loop_pre_header
                  _
                $region76: #{fgcn_forward.5} parent=66 // loop_header
                  %s369 = sphi 0, %s373
                  %p370 = scmp.ge.s32.totalorder %s369, 1
                  %s374 = sphi %s307, %s307
                  %s375 = sphi %s302, %s302
                $region77: #{fgcn_forward.5} parent=66 // loop_header_branch
                  %372 = sbr.rel (%p370) target = $region81
                $region78: #{fgcn_forward.5} parent=66 // loop_body
                  %v376 = vld [vmem:[%s374] sm:%s367]
                  %377 = vst [vmem:[%s375] sm:%s367] %v376
                  %v378 = vld [vmem:[%s374 + $0x8] sm:%s367]
                  %379 = vst [vmem:[%s375 + $0x4] sm:%s367] %v378
                  %v380 = vld [vmem:[%s374 + $0x10] sm:%s367]
                  %381 = vst [vmem:[%s375 + $0x8] sm:%s367] %v380
                  %v382 = vld [vmem:[%s374 + $0x18] sm:%s367]
                  %383 = vst [vmem:[%s375 + $0xc] sm:%s367] %v382
                  %v384 = vld [vmem:[%s374 + $0x20] sm:%s367]
                  %385 = vst [vmem:[%s375 + $0x10] sm:%s367] %v384
                  %v386 = vld [vmem:[%s374 + $0x28] sm:%s367]
                  %387 = vst [vmem:[%s375 + $0x14] sm:%s367] %v386
                  %v388 = vld [vmem:[%s374 + $0x30] sm:%s367]
                  %389 = vst [vmem:[%s375 + $0x18] sm:%s367] %v388
                  %v390 = vld [vmem:[%s374 + $0x38] sm:%s367]
                  %391 = vst [vmem:[%s375 + $0x1c] sm:%s367] %v390
                  %v392 = vld [vmem:[%s374 + $0x40] sm:%s367]
                  %393 = vst [vmem:[%s375 + $0x20] sm:%s367] %v392
                  %v394 = vld [vmem:[%s374 + $0x48] sm:%s367]
                  %395 = vst [vmem:[%s375 + $0x24] sm:%s367] %v394
                  %v396 = vld [vmem:[%s374 + $0x50] sm:%s367]
                  %397 = vst [vmem:[%s375 + $0x28] sm:%s367] %v396
                  %v398 = vld [vmem:[%s374 + $0x58] sm:%s367]
                  %399 = vst [vmem:[%s375 + $0x2c] sm:%s367] %v398
                  %v400 = vld [vmem:[%s374 + $0x60] sm:%s367]
                  %401 = vst [vmem:[%s375 + $0x30] sm:%s367] %v400
                  %v402 = vld [vmem:[%s374 + $0x68] sm:%s367]
                  %403 = vst [vmem:[%s375 + $0x34] sm:%s367] %v402
                  %v404 = vld [vmem:[%s374 + $0x70] sm:%s367]
                  %405 = vst [vmem:[%s375 + $0x38] sm:%s367] %v404
                  %v406 = vld [vmem:[%s374 + $0x78] sm:%s367]
                  %407 = vst [vmem:[%s375 + $0x3c] sm:%s367] %v406
                $region79: #{fgcn_forward.5} parent=66 // loop_footer
                  %s373 = sadd.s32 1, %s369
                $region80: #{fgcn_forward.5} parent=66 // loop_footer_branch
                  %368 = sbr.rel target = $region76
                $region81: #{fgcn_forward.5} parent=66 // loop_exit
                  _
              $region67: #{fgcn_forward.5} parent=51 // pred_fallthru
                _
            $region52: #{fgcn_forward.5} parent=47 // pred_fallthru
              _
            // Predicated region
            $region53: #{fgcn_forward.5} parent=47 // pred_check
              _
            $region54: #{fgcn_forward.5} parent=47 // pred_check_branch
              %313 = sbr.rel (0) target = $region56
            $region55: #{fgcn_forward.5} parent=47 // pred_region
              %s315 = ssub.s32 16, 1
              loop: start=0, step=1, limit=1
              $region57: #{fgcn_forward.5} parent=55 // loop_pre_header
                _
              $region58: #{fgcn_forward.5} parent=55 // loop_header
                %s317 = sphi 0, %s321
                %p318 = scmp.ge.s32.totalorder %s317, 1
                %s322 = sphi %s307, %s307
                %s323 = sphi %s302, %s302
              $region59: #{fgcn_forward.5} parent=55 // loop_header_branch
                %320 = sbr.rel (%p318) target = $region63
              $region60: #{fgcn_forward.5} parent=55 // loop_body
                %v324 = vld [vmem:[%s322] sm:%s315]
                %325 = vst [vmem:[%s323] sm:%s315] %v324
                %v326 = vld [vmem:[%s322 + $0x8] sm:%s315]
                %327 = vst [vmem:[%s323 + $0x4] sm:%s315] %v326
                %v328 = vld [vmem:[%s322 + $0x10] sm:%s315]
                %329 = vst [vmem:[%s323 + $0x8] sm:%s315] %v328
                %v330 = vld [vmem:[%s322 + $0x18] sm:%s315]
                %331 = vst [vmem:[%s323 + $0xc] sm:%s315] %v330
                %v332 = vld [vmem:[%s322 + $0x20] sm:%s315]
                %333 = vst [vmem:[%s323 + $0x10] sm:%s315] %v332
                %v334 = vld [vmem:[%s322 + $0x28] sm:%s315]
                %335 = vst [vmem:[%s323 + $0x14] sm:%s315] %v334
                %v336 = vld [vmem:[%s322 + $0x30] sm:%s315]
                %337 = vst [vmem:[%s323 + $0x18] sm:%s315] %v336
                %v338 = vld [vmem:[%s322 + $0x38] sm:%s315]
                %339 = vst [vmem:[%s323 + $0x1c] sm:%s315] %v338
                %v340 = vld [vmem:[%s322 + $0x40] sm:%s315]
                %341 = vst [vmem:[%s323 + $0x20] sm:%s315] %v340
                %v342 = vld [vmem:[%s322 + $0x48] sm:%s315]
                %343 = vst [vmem:[%s323 + $0x24] sm:%s315] %v342
                %v344 = vld [vmem:[%s322 + $0x50] sm:%s315]
                %345 = vst [vmem:[%s323 + $0x28] sm:%s315] %v344
                %v346 = vld [vmem:[%s322 + $0x58] sm:%s315]
                %347 = vst [vmem:[%s323 + $0x2c] sm:%s315] %v346
                %v348 = vld [vmem:[%s322 + $0x60] sm:%s315]
                %349 = vst [vmem:[%s323 + $0x30] sm:%s315] %v348
                %v350 = vld [vmem:[%s322 + $0x68] sm:%s315]
                %351 = vst [vmem:[%s323 + $0x34] sm:%s315] %v350
                %v352 = vld [vmem:[%s322 + $0x70] sm:%s315]
                %353 = vst [vmem:[%s323 + $0x38] sm:%s315] %v352
                %v354 = vld [vmem:[%s322 + $0x78] sm:%s315]
                %355 = vst [vmem:[%s323 + $0x3c] sm:%s315] %v354
              $region61: #{fgcn_forward.5} parent=55 // loop_footer
                %s321 = sadd.s32 1, %s317
              $region62: #{fgcn_forward.5} parent=55 // loop_footer_branch
                %316 = sbr.rel target = $region58
              $region63: #{fgcn_forward.5} parent=55 // loop_exit
                _
            $region56: #{fgcn_forward.5} parent=47 // pred_fallthru
              _
          $region48: #{fgcn_forward.5} parent=43 // pred_fallthru
            _
          %408 = vnop
        $region44: #{fgcn_forward.5} parent=39 // pred_fallthru
          _
        // Predicated region
        $region82: #{fgcn_forward.5} parent=39 // pred_check
          %p409 = pneg %p75
        $region83: #{fgcn_forward.5} parent=39 // pred_check_branch
          %411 = sbr.rel (%p409) target = $region85
        $region84: #{fgcn_forward.5} parent=39 // pred_region
          %s412 = smul.u32 16, %s23
          %p413 = scmp.lt.s32.totalorder %s412, 31
          %s414 = scalar_select %p413, %s412, 31
          %s415 = smul.addr %s414, 8
          %s416 = scalar_lea.vmem %s1, %s415
          %s417 = smul.u32 16, %s23
        $region85: #{fgcn_forward.5} parent=39 // pred_fallthru
          _
        // Predicated region
        $region86: #{fgcn_forward.5} parent=39 // pred_check
          %p418 = pneg %p101
        $region87: #{fgcn_forward.5} parent=39 // pred_check_branch
          %420 = sbr.rel (%p418) target = $region89
        $region88: #{fgcn_forward.5} parent=39 // pred_region
          %s421 = smul.u32 16, %s22
          %p422 = scmp.lt.s32.totalorder %s421, 31
          %s423 = scalar_select %p422, %s421, 31
          %s424 = smul.addr %s423, 8
          %s425 = scalar_lea.vmem %s2, %s424
          %s426 = smul.u32 16, %s22
        $region89: #{fgcn_forward.5} parent=39 // pred_fallthru
          _
      $region40: #{fgcn_forward.5} parent=5 // pred_fallthru
        _
      %p427 = scmp.le.s32.totalorder 1, %s15
      %p428 = scmp.lt.s32.totalorder %s15, 5
      %p429 = pnand %p427, %p428
      %p430 = pneg %p429
      // Predicated region
      $region90: #{fgcn_forward.5} parent=5 // pred_check
        _
      $region91: #{fgcn_forward.5} parent=5 // pred_check_branch
        %432 = sbr.rel (%p429) target = $region93
      $region92: #{fgcn_forward.5} parent=5 // pred_region
        %s433 = ssub.s32 %s15, 1
        %s434 = sand.u32 %s42, 1
        %s435 = sand.u32 %s42, 1
        %s436 = smul.addr %s435, 64
        %s437 = scalar_lea.vmem [#allocation3], %s436
        // Predicated region
        $region94: #{fgcn_forward.5} parent=92 // pred_check
          %p438 = pneg %p55
        $region95: #{fgcn_forward.5} parent=92 // pred_check_branch
          %440 = sbr.rel (%p438) target = $region97
        $region96: #{fgcn_forward.5} parent=92 // pred_region
          _
        $region97: #{fgcn_forward.5} parent=92 // pred_fallthru
          _
        %s441 = sand.u32 %s42, 1
        %s442 = sand.u32 %s42, 1
        %s443 = smul.addr %s442, 64
        %s444 = scalar_lea.vmem [#allocation3], %s443
        %p445 = pneg %p55
        %p446 = pneg %p52
        %s447 = smul.u32 16, %s25
        %p448 = scmp.lt.s32.totalorder %s447, 31
        %s449 = scalar_select %p448, %s447, 31
        %s450 = smul.addr %s449, 8
        %s451 = scalar_lea.vmem %s1, %s450
        %p452 = pneg %p81
        %p453 = pneg %p78
        %s454 = smul.u32 16, %s24
        %p455 = scmp.lt.s32.totalorder %s454, 31
        %s456 = scalar_select %p455, %s454, 31
        %s457 = smul.addr %s456, 8
        %s458 = scalar_lea.vmem %s2, %s457
        %p459 = pneg %p107
        %p460 = pneg %p104
        %p461 = pneg %p128
        %p462 = pneg %p125
        %p463 = pneg %p149
        %p464 = pneg %p146
        %p465 = pneg %p170
        %p466 = pneg %p167
        %p467 = pneg %p191
        %p468 = pneg %p188
        %p469 = pneg %p212
        %p470 = pneg %p209
        %p471 = pneg %p233
        %p472 = pneg %p230
        %p473 = pneg %p259
        %p474 = pneg %p256
        %s475 = smul.u32 16, %s24
        %p476 = scmp.lt.s32.totalorder %s475, 31
        %s477 = scalar_select %p476, %s475, 31
        %s478 = smul.addr %s477, 8
        %s479 = scalar_lea.vmem %s9, %s478
        %s480 = smul.u32 16, %s24
        %s481 = smul.u32 16, %s25
        %p482 = scmp.lt.s32.totalorder %s481, 31
        %s483 = scalar_select %p482, %s481, 31
        %s484 = smul.addr %s483, 8
        %s485 = scalar_lea.vmem %s1, %s484
        %s486 = smul.u32 16, %s25
        %s487 = smul.u32 16, %s24
        %p488 = scmp.lt.s32.totalorder %s487, 31
        %s489 = scalar_select %p488, %s487, 31
        %s490 = smul.addr %s489, 8
        %s491 = scalar_lea.vmem %s2, %s490
        %s492 = smul.u32 16, %s24
        %s493 = smul.u32 16, %s24
        %p494 = scmp.lt.s32.totalorder %s493, 31
        %s495 = scalar_select %p494, %s493, 31
        %s496 = smul.addr %s495, 8
        %s497 = scalar_lea.vmem %s9, %s496
        %s498 = smul.u32 16, %s24
        %p499 = scmp.eq.s32.totalorder %s25, 0
        // Predicated region
        $region98: #{fgcn_forward.5} parent=92 // pred_check
          %p500 = pneg %p499
        $region99: #{fgcn_forward.5} parent=92 // pred_check_branch
          %502 = sbr.rel (%p500) target = $region101
        $region100: #{fgcn_forward.5} parent=92 // pred_region
          %503 = vst [vmem:[#allocation2] sm:$0xff] 0.0
          %504 = vst [vmem:[#allocation2 + $0x8] sm:$0xff] 0.0
          %505 = vst [vmem:[#allocation2 + $0x10] sm:$0xff] 0.0
          %506 = vst [vmem:[#allocation2 + $0x18] sm:$0xff] 0.0
          %507 = vst [vmem:[#allocation2 + $0x20] sm:$0xff] 0.0
          %508 = vst [vmem:[#allocation2 + $0x28] sm:$0xff] 0.0
          %509 = vst [vmem:[#allocation2 + $0x30] sm:$0xff] 0.0
          %510 = vst [vmem:[#allocation2 + $0x38] sm:$0xff] 0.0
          %511 = vst [vmem:[#allocation2 + $0x40] sm:$0xff] 0.0
          %512 = vst [vmem:[#allocation2 + $0x48] sm:$0xff] 0.0
          %513 = vst [vmem:[#allocation2 + $0x50] sm:$0xff] 0.0
          %514 = vst [vmem:[#allocation2 + $0x58] sm:$0xff] 0.0
          %515 = vst [vmem:[#allocation2 + $0x60] sm:$0xff] 0.0
          %516 = vst [vmem:[#allocation2 + $0x68] sm:$0xff] 0.0
          %517 = vst [vmem:[#allocation2 + $0x70] sm:$0xff] 0.0
          %518 = vst [vmem:[#allocation2 + $0x78] sm:$0xff] 0.0
        $region101: #{fgcn_forward.5} parent=92 // pred_fallthru
          _
        %v519 = vld [vmem:[#allocation2] sm:$0xff]
        %v520 = vld [vmem:[#allocation2 + $0x8] sm:$0xff]
        %v521 = vld [vmem:[#allocation2 + $0x10] sm:$0xff]
        %v522 = vld [vmem:[#allocation2 + $0x18] sm:$0xff]
        %v523 = vld [vmem:[#allocation2 + $0x20] sm:$0xff]
        %v524 = vld [vmem:[#allocation2 + $0x28] sm:$0xff]
        %v525 = vld [vmem:[#allocation2 + $0x30] sm:$0xff]
        %v526 = vld [vmem:[#allocation2 + $0x38] sm:$0xff]
        %v527 = vld [vmem:[#allocation2 + $0x40] sm:$0xff]
        %v528 = vld [vmem:[#allocation2 + $0x48] sm:$0xff]
        %v529 = vld [vmem:[#allocation2 + $0x50] sm:$0xff]
        %v530 = vld [vmem:[#allocation2 + $0x58] sm:$0xff]
        %v531 = vld [vmem:[#allocation2 + $0x60] sm:$0xff]
        %v532 = vld [vmem:[#allocation2 + $0x68] sm:$0xff]
        %v533 = vld [vmem:[#allocation2 + $0x70] sm:$0xff]
        %v534 = vld [vmem:[#allocation2 + $0x78] sm:$0xff]
        %v535 = vld [vmem:[%s437] sm:$0xf]
        %v536 = vld [vmem:[%s437 + $0x4] sm:$0xf]
        %v537 = vld [vmem:[%s437 + $0x8] sm:$0xf]
        %v538 = vld [vmem:[%s437 + $0xc] sm:$0xf]
        %v539 = vld [vmem:[%s437 + $0x10] sm:$0xf]
        %v540 = vld [vmem:[%s437 + $0x14] sm:$0xf]
        %v541 = vld [vmem:[%s437 + $0x18] sm:$0xf]
        %v542 = vld [vmem:[%s437 + $0x1c] sm:$0xf]
        %v543 = vld [vmem:[%s437 + $0x20] sm:$0xf]
        %v544 = vld [vmem:[%s437 + $0x24] sm:$0xf]
        %v545 = vld [vmem:[%s437 + $0x28] sm:$0xf]
        %v546 = vld [vmem:[%s437 + $0x2c] sm:$0xf]
        %v547 = vld [vmem:[%s437 + $0x30] sm:$0xf]
        %v548 = vld [vmem:[%s437 + $0x34] sm:$0xf]
        %v549 = vld [vmem:[%s437 + $0x38] sm:$0xf]
        %v550 = vld [vmem:[%s437 + $0x3c] sm:$0xf]
        %v551 = vld [vmem:[%s485] sm:$0xff]
        %v552 = vld [vmem:[%s485 + $0x8] sm:$0xff]
        %v553 = vld [vmem:[%s485 + $0x10] sm:$0xff]
        %v554 = vld [vmem:[%s485 + $0x18] sm:$0xff]
        %v555 = vld [vmem:[%s485 + $0x20] sm:$0xff]
        %v556 = vld [vmem:[%s485 + $0x28] sm:$0xff]
        %v557 = vld [vmem:[%s485 + $0x30] sm:$0xff]
        %v558 = vld [vmem:[%s485 + $0x38] sm:$0xff]
        %v559 = vld [vmem:[%s485 + $0x40] sm:$0xff]
        %v560 = vld [vmem:[%s485 + $0x48] sm:$0xff]
        %v561 = vld [vmem:[%s485 + $0x50] sm:$0xff]
        %v562 = vld [vmem:[%s485 + $0x58] sm:$0xff]
        %v563 = vld [vmem:[%s485 + $0x60] sm:$0xff]
        %v564 = vld [vmem:[%s485 + $0x68] sm:$0xff]
        %v565 = vld [vmem:[%s485 + $0x70] sm:$0xff]
        %v566 = vld [vmem:[%s485 + $0x78] sm:$0xff]
        %v567 = vpack.c.bf16 %v552, %v551
        %v568 = vpack.c.bf16 %v554, %v553
        %v569 = vpack.c.bf16 %v556, %v555
        %v570 = vpack.c.bf16 %v558, %v557
        %v571 = vpack.c.bf16 %v560, %v559
        %v572 = vpack.c.bf16 %v562, %v561
        %v573 = vpack.c.bf16 %v564, %v563
        %v574 = vpack.c.bf16 %v566, %v565
        %v591 = vunpack.c.l.b16 %v535
        %v592 = vunpack.c.l.b16 %v536
        %v593 = vunpack.c.l.b16 %v537
        %v594 = vunpack.c.l.b16 %v538
        %v595 = vunpack.c.l.b16 %v539
        %v596 = vunpack.c.l.b16 %v540
        %v597 = vunpack.c.l.b16 %v541
        %v598 = vunpack.c.l.b16 %v542
        %v599 = vunpack.c.l.b16 %v543
        %v600 = vunpack.c.l.b16 %v544
        %v601 = vunpack.c.l.b16 %v545
        %v602 = vunpack.c.l.b16 %v546
        %v603 = vunpack.c.l.b16 %v547
        %v604 = vunpack.c.l.b16 %v548
        %v605 = vunpack.c.l.b16 %v549
        %v606 = vunpack.c.l.b16 %v550
        %v607 = vpack.c.b16 %v592, %v591
        %v608 = vpack.c.b16 %v594, %v593
        %v609 = vpack.c.b16 %v596, %v595
        %v610 = vpack.c.b16 %v598, %v597
        %v611 = vpack.c.b16 %v600, %v599
        %v612 = vpack.c.b16 %v602, %v601
        %v613 = vpack.c.b16 %v604, %v603
        %v614 = vpack.c.b16 %v606, %v605
        %623 = vmatpush.bf16.msra.mxu0 %v574
        %624 = vmatpush.bf16.msra.mxu0 %v573
        %625 = vmatpush.bf16.msra.mxu0 %v572
        %626 = vmatpush.bf16.msra.mxu0 %v571
        %627 = vmatpush.bf16.msra.mxu0 %v570
        %628 = vmatpush.bf16.msra.mxu0 %v569
        %629 = vmatpush.bf16.msra.mxu0 %v568
        %630 = vmatpush.bf16.msra.mxu0 %v567
        %631 = vmatmul.bf16.gmra.mxu0 %v607
        %v632 = vpop.f32.mrf.mxu0
        %v633 = vadd.f32 0.0, %v632
        %v634 = vpop.f32.mrf.mxu0
        %v635 = vadd.f32 0.0, %v634
        %636 = vmatmul.bf16.gmra.mxu0 %v608
        %v637 = vpop.f32.mrf.mxu0
        %v638 = vadd.f32 0.0, %v637
        %v639 = vpop.f32.mrf.mxu0
        %v640 = vadd.f32 0.0, %v639
        %641 = vmatmul.bf16.gmra.mxu0 %v609
        %v642 = vpop.f32.mrf.mxu0
        %v643 = vadd.f32 0.0, %v642
        %v644 = vpop.f32.mrf.mxu0
        %v645 = vadd.f32 0.0, %v644
        %646 = vmatmul.bf16.gmra.mxu0 %v610
        %v647 = vpop.f32.mrf.mxu0
        %v648 = vadd.f32 0.0, %v647
        %v649 = vpop.f32.mrf.mxu0
        %v650 = vadd.f32 0.0, %v649
        %651 = vmatmul.bf16.gmra.mxu0 %v611
        %v652 = vpop.f32.mrf.mxu0
        %v653 = vadd.f32 0.0, %v652
        %v654 = vpop.f32.mrf.mxu0
        %v655 = vadd.f32 0.0, %v654
        %656 = vmatmul.bf16.gmra.mxu0 %v612
        %v657 = vpop.f32.mrf.mxu0
        %v658 = vadd.f32 0.0, %v657
        %v659 = vpop.f32.mrf.mxu0
        %v660 = vadd.f32 0.0, %v659
        %661 = vmatmul.bf16.gmra.mxu0 %v613
        %v662 = vpop.f32.mrf.mxu0
        %v663 = vadd.f32 0.0, %v662
        %v664 = vpop.f32.mrf.mxu0
        %v665 = vadd.f32 0.0, %v664
        %666 = vmatmul.bf16.gmra.mxu0 %v614
        %v667 = vpop.f32.mrf.mxu0
        %v668 = vadd.f32 0.0, %v667
        %v669 = vpop.f32.mrf.mxu0
        %v670 = vadd.f32 0.0, %v669
        %671 = vdwg.mxu0
        %v672 = vadd.f32 %v519, %v633
        %v673 = vadd.f32 %v520, %v635
        %v674 = vadd.f32 %v521, %v638
        %v675 = vadd.f32 %v522, %v640
        %v676 = vadd.f32 %v523, %v643
        %v677 = vadd.f32 %v524, %v645
        %v678 = vadd.f32 %v525, %v648
        %v679 = vadd.f32 %v526, %v650
        %v680 = vadd.f32 %v527, %v653
        %v681 = vadd.f32 %v528, %v655
        %v682 = vadd.f32 %v529, %v658
        %v683 = vadd.f32 %v530, %v660
        %v684 = vadd.f32 %v531, %v663
        %v685 = vadd.f32 %v532, %v665
        %v686 = vadd.f32 %v533, %v668
        %v687 = vadd.f32 %v534, %v670
        %688 = vst [vmem:[#allocation2] sm:$0xff] %v672
        %689 = vst [vmem:[#allocation2 + $0x8] sm:$0xff] %v673
        %690 = vst [vmem:[#allocation2 + $0x10] sm:$0xff] %v674
        %691 = vst [vmem:[#allocation2 + $0x18] sm:$0xff] %v675
        %692 = vst [vmem:[#allocation2 + $0x20] sm:$0xff] %v676
        %693 = vst [vmem:[#allocation2 + $0x28] sm:$0xff] %v677
        %694 = vst [vmem:[#allocation2 + $0x30] sm:$0xff] %v678
        %695 = vst [vmem:[#allocation2 + $0x38] sm:$0xff] %v679
        %696 = vst [vmem:[#allocation2 + $0x40] sm:$0xff] %v680
        %697 = vst [vmem:[#allocation2 + $0x48] sm:$0xff] %v681
        %698 = vst [vmem:[#allocation2 + $0x50] sm:$0xff] %v682
        %699 = vst [vmem:[#allocation2 + $0x58] sm:$0xff] %v683
        %700 = vst [vmem:[#allocation2 + $0x60] sm:$0xff] %v684
        %701 = vst [vmem:[#allocation2 + $0x68] sm:$0xff] %v685
        %702 = vst [vmem:[#allocation2 + $0x70] sm:$0xff] %v686
        %703 = vst [vmem:[#allocation2 + $0x78] sm:$0xff] %v687
        %p704 = scmp.eq.s32.totalorder %s25, 1
        // Predicated region
        $region102: #{fgcn_forward.5} parent=92 // pred_check
          %p705 = pneg %p704
        $region103: #{fgcn_forward.5} parent=92 // pred_check_branch
          %707 = sbr.rel (%p705) target = $region105
        $region104: #{fgcn_forward.5} parent=92 // pred_region
          %v708 = vld [vmem:[#allocation2] sm:$0xff]
          %v709 = vld [vmem:[#allocation2 + $0x8] sm:$0xff]
          %v710 = vld [vmem:[#allocation2 + $0x10] sm:$0xff]
          %v711 = vld [vmem:[#allocation2 + $0x18] sm:$0xff]
          %v712 = vld [vmem:[#allocation2 + $0x20] sm:$0xff]
          %v713 = vld [vmem:[#allocation2 + $0x28] sm:$0xff]
          %v714 = vld [vmem:[#allocation2 + $0x30] sm:$0xff]
          %v715 = vld [vmem:[#allocation2 + $0x38] sm:$0xff]
          %v716 = vld [vmem:[#allocation2 + $0x40] sm:$0xff]
          %v717 = vld [vmem:[#allocation2 + $0x48] sm:$0xff]
          %v718 = vld [vmem:[#allocation2 + $0x50] sm:$0xff]
          %v719 = vld [vmem:[#allocation2 + $0x58] sm:$0xff]
          %v720 = vld [vmem:[#allocation2 + $0x60] sm:$0xff]
          %v721 = vld [vmem:[#allocation2 + $0x68] sm:$0xff]
          %v722 = vld [vmem:[#allocation2 + $0x70] sm:$0xff]
          %v723 = vld [vmem:[#allocation2 + $0x78] sm:$0xff]
          %v724 = vpack.c.bf16 %v709, %v708
          %v725 = vpack.c.bf16 %v711, %v710
          %v726 = vpack.c.bf16 %v713, %v712
          %v727 = vpack.c.bf16 %v715, %v714
          %v728 = vpack.c.bf16 %v717, %v716
          %v729 = vpack.c.bf16 %v719, %v718
          %v730 = vpack.c.bf16 %v721, %v720
          %v731 = vpack.c.bf16 %v723, %v722
          %v732 = vld [vmem:[%s3] sm:$0xf]
          %v733 = vld [vmem:[%s3 + $0x4] sm:$0xf]
          %v734 = vld [vmem:[%s3 + $0x8] sm:$0xf]
          %v735 = vld [vmem:[%s3 + $0xc] sm:$0xf]
          %v736 = vld [vmem:[%s3 + $0x10] sm:$0xf]
          %v737 = vld [vmem:[%s3 + $0x14] sm:$0xf]
          %v738 = vld [vmem:[%s3 + $0x18] sm:$0xf]
          %v739 = vld [vmem:[%s3 + $0x1c] sm:$0xf]
          %v740 = vld [vmem:[%s3 + $0x20] sm:$0xf]
          %v741 = vld [vmem:[%s3 + $0x24] sm:$0xf]
          %v742 = vld [vmem:[%s3 + $0x28] sm:$0xf]
          %v743 = vld [vmem:[%s3 + $0x2c] sm:$0xf]
          %v744 = vld [vmem:[%s3 + $0x30] sm:$0xf]
          %v745 = vld [vmem:[%s3 + $0x34] sm:$0xf]
          %v746 = vld [vmem:[%s3 + $0x38] sm:$0xf]
          %v747 = vld [vmem:[%s3 + $0x3c] sm:$0xf]
          %v748 = vld [vmem:[%s4] sm:$0x1]
          %v750 = vperm.slane %v748, 0
          %v768 = vunpack.c.l.b16 %v732
          %v769 = vunpack.c.l.b16 %v733
          %v770 = vunpack.c.l.b16 %v734
          %v771 = vunpack.c.l.b16 %v735
          %v772 = vunpack.c.l.b16 %v736
          %v773 = vunpack.c.l.b16 %v737
          %v774 = vunpack.c.l.b16 %v738
          %v775 = vunpack.c.l.b16 %v739
          %v776 = vunpack.c.l.b16 %v740
          %v777 = vunpack.c.l.b16 %v741
          %v778 = vunpack.c.l.b16 %v742
          %v779 = vunpack.c.l.b16 %v743
          %v780 = vunpack.c.l.b16 %v744
          %v781 = vunpack.c.l.b16 %v745
          %v782 = vunpack.c.l.b16 %v746
          %v783 = vunpack.c.l.b16 %v747
          %v784 = vpack.c.b16 %v769, %v768
          %v785 = vpack.c.b16 %v771, %v770
          %v786 = vpack.c.b16 %v773, %v772
          %v787 = vpack.c.b16 %v775, %v774
          %v788 = vpack.c.b16 %v777, %v776
          %v789 = vpack.c.b16 %v779, %v778
          %v790 = vpack.c.b16 %v781, %v780
          %v791 = vpack.c.b16 %v783, %v782
          %800 = vmatpush.bf16.msra.mxu0 %v791
          %801 = vmatpush.bf16.msra.mxu0 %v790
          %802 = vmatpush.bf16.msra.mxu0 %v789
          %803 = vmatpush.bf16.msra.mxu0 %v788
          %804 = vmatpush.bf16.msra.mxu0 %v787
          %805 = vmatpush.bf16.msra.mxu0 %v786
          %806 = vmatpush.bf16.msra.mxu0 %v785
          %807 = vmatpush.bf16.msra.mxu0 %v784
          %808 = vmatmul.bf16.gmra.mxu0 %v724
          %v809 = vpop.f32.mrf.mxu0
          %v810 = vadd.f32 %v750, %v809
          %v811 = vpop.f32.mrf.mxu0
          %v812 = vadd.f32 %v750, %v811
          %813 = vmatmul.bf16.gmra.mxu0 %v725
          %v814 = vpop.f32.mrf.mxu0
          %v815 = vadd.f32 %v750, %v814
          %v816 = vpop.f32.mrf.mxu0
          %v817 = vadd.f32 %v750, %v816
          %818 = vmatmul.bf16.gmra.mxu0 %v726
          %v819 = vpop.f32.mrf.mxu0
          %v820 = vadd.f32 %v750, %v819
          %v821 = vpop.f32.mrf.mxu0
          %v822 = vadd.f32 %v750, %v821
          %823 = vmatmul.bf16.gmra.mxu0 %v727
          %v824 = vpop.f32.mrf.mxu0
          %v825 = vadd.f32 %v750, %v824
          %v826 = vpop.f32.mrf.mxu0
          %v827 = vadd.f32 %v750, %v826
          %828 = vmatmul.bf16.gmra.mxu0 %v728
          %v829 = vpop.f32.mrf.mxu0
          %v830 = vadd.f32 %v750, %v829
          %v831 = vpop.f32.mrf.mxu0
          %v832 = vadd.f32 %v750, %v831
          %833 = vmatmul.bf16.gmra.mxu0 %v729
          %v834 = vpop.f32.mrf.mxu0
          %v835 = vadd.f32 %v750, %v834
          %v836 = vpop.f32.mrf.mxu0
          %v837 = vadd.f32 %v750, %v836
          %838 = vmatmul.bf16.gmra.mxu0 %v730
          %v839 = vpop.f32.mrf.mxu0
          %v840 = vadd.f32 %v750, %v839
          %v841 = vpop.f32.mrf.mxu0
          %v842 = vadd.f32 %v750, %v841
          %843 = vmatmul.bf16.gmra.mxu0 %v731
          %v844 = vpop.f32.mrf.mxu0
          %v845 = vadd.f32 %v750, %v844
          %v846 = vpop.f32.mrf.mxu0
          %v847 = vadd.f32 %v750, %v846
          %848 = vdwg.mxu0
          %v849 = vmax.f32 %v810, 0.0
          %v850 = vmax.f32 %v812, 0.0
          %v851 = vmax.f32 %v815, 0.0
          %v852 = vmax.f32 %v817, 0.0
          %v853 = vmax.f32 %v820, 0.0
          %v854 = vmax.f32 %v822, 0.0
          %v855 = vmax.f32 %v825, 0.0
          %v856 = vmax.f32 %v827, 0.0
          %v857 = vmax.f32 %v830, 0.0
          %v858 = vmax.f32 %v832, 0.0
          %v859 = vmax.f32 %v835, 0.0
          %v860 = vmax.f32 %v837, 0.0
          %v861 = vmax.f32 %v840, 0.0
          %v862 = vmax.f32 %v842, 0.0
          %v863 = vmax.f32 %v845, 0.0
          %v864 = vmax.f32 %v847, 0.0
          %v865 = vpack.c.bf16 %v850, %v849
          %v866 = vpack.c.bf16 %v852, %v851
          %v867 = vpack.c.bf16 %v854, %v853
          %v868 = vpack.c.bf16 %v856, %v855
          %v869 = vpack.c.bf16 %v858, %v857
          %v870 = vpack.c.bf16 %v860, %v859
          %v871 = vpack.c.bf16 %v862, %v861
          %v872 = vpack.c.bf16 %v864, %v863
          %v873 = vld [vmem:[%s5] sm:$0xf]
          %v874 = vld [vmem:[%s5 + $0x4] sm:$0xf]
          %v875 = vld [vmem:[%s5 + $0x8] sm:$0xf]
          %v876 = vld [vmem:[%s5 + $0xc] sm:$0xf]
          %v877 = vld [vmem:[%s5 + $0x10] sm:$0xf]
          %v878 = vld [vmem:[%s5 + $0x14] sm:$0xf]
          %v879 = vld [vmem:[%s5 + $0x18] sm:$0xf]
          %v880 = vld [vmem:[%s5 + $0x1c] sm:$0xf]
          %v881 = vld [vmem:[%s5 + $0x20] sm:$0xf]
          %v882 = vld [vmem:[%s5 + $0x24] sm:$0xf]
          %v883 = vld [vmem:[%s5 + $0x28] sm:$0xf]
          %v884 = vld [vmem:[%s5 + $0x2c] sm:$0xf]
          %v885 = vld [vmem:[%s5 + $0x30] sm:$0xf]
          %v886 = vld [vmem:[%s5 + $0x34] sm:$0xf]
          %v887 = vld [vmem:[%s5 + $0x38] sm:$0xf]
          %v888 = vld [vmem:[%s5 + $0x3c] sm:$0xf]
          %v889 = vld [vmem:[%s6] sm:$0x1]
          %v891 = vperm.slane %v889, 0
          %v909 = vunpack.c.l.b16 %v873
          %v910 = vunpack.c.l.b16 %v874
          %v911 = vunpack.c.l.b16 %v875
          %v912 = vunpack.c.l.b16 %v876
          %v913 = vunpack.c.l.b16 %v877
          %v914 = vunpack.c.l.b16 %v878
          %v915 = vunpack.c.l.b16 %v879
          %v916 = vunpack.c.l.b16 %v880
          %v917 = vunpack.c.l.b16 %v881
          %v918 = vunpack.c.l.b16 %v882
          %v919 = vunpack.c.l.b16 %v883
          %v920 = vunpack.c.l.b16 %v884
          %v921 = vunpack.c.l.b16 %v885
          %v922 = vunpack.c.l.b16 %v886
          %v923 = vunpack.c.l.b16 %v887
          %v924 = vunpack.c.l.b16 %v888
          %v925 = vpack.c.b16 %v910, %v909
          %v926 = vpack.c.b16 %v912, %v911
          %v927 = vpack.c.b16 %v914, %v913
          %v928 = vpack.c.b16 %v916, %v915
          %v929 = vpack.c.b16 %v918, %v917
          %v930 = vpack.c.b16 %v920, %v919
          %v931 = vpack.c.b16 %v922, %v921
          %v932 = vpack.c.b16 %v924, %v923
          %941 = vmatpush.bf16.msra.mxu0 %v932
          %942 = vmatpush.bf16.msra.mxu0 %v931
          %943 = vmatpush.bf16.msra.mxu0 %v930
          %944 = vmatpush.bf16.msra.mxu0 %v929
          %945 = vmatpush.bf16.msra.mxu0 %v928
          %946 = vmatpush.bf16.msra.mxu0 %v927
          %947 = vmatpush.bf16.msra.mxu0 %v926
          %948 = vmatpush.bf16.msra.mxu0 %v925
          %949 = vmatmul.bf16.gmra.mxu0 %v865
          %v950 = vpop.f32.mrf.mxu0
          %v951 = vadd.f32 %v891, %v950
          %v952 = vpop.f32.mrf.mxu0
          %v953 = vadd.f32 %v891, %v952
          %954 = vmatmul.bf16.gmra.mxu0 %v866
          %v955 = vpop.f32.mrf.mxu0
          %v956 = vadd.f32 %v891, %v955
          %v957 = vpop.f32.mrf.mxu0
          %v958 = vadd.f32 %v891, %v957
          %959 = vmatmul.bf16.gmra.mxu0 %v867
          %v960 = vpop.f32.mrf.mxu0
          %v961 = vadd.f32 %v891, %v960
          %v962 = vpop.f32.mrf.mxu0
          %v963 = vadd.f32 %v891, %v962
          %964 = vmatmul.bf16.gmra.mxu0 %v868
          %v965 = vpop.f32.mrf.mxu0
          %v966 = vadd.f32 %v891, %v965
          %v967 = vpop.f32.mrf.mxu0
          %v968 = vadd.f32 %v891, %v967
          %969 = vmatmul.bf16.gmra.mxu0 %v869
          %v970 = vpop.f32.mrf.mxu0
          %v971 = vadd.f32 %v891, %v970
          %v972 = vpop.f32.mrf.mxu0
          %v973 = vadd.f32 %v891, %v972
          %974 = vmatmul.bf16.gmra.mxu0 %v870
          %v975 = vpop.f32.mrf.mxu0
          %v976 = vadd.f32 %v891, %v975
          %v977 = vpop.f32.mrf.mxu0
          %v978 = vadd.f32 %v891, %v977
          %979 = vmatmul.bf16.gmra.mxu0 %v871
          %v980 = vpop.f32.mrf.mxu0
          %v981 = vadd.f32 %v891, %v980
          %v982 = vpop.f32.mrf.mxu0
          %v983 = vadd.f32 %v891, %v982
          %984 = vmatmul.bf16.gmra.mxu0 %v872
          %v985 = vpop.f32.mrf.mxu0
          %v986 = vadd.f32 %v891, %v985
          %v987 = vpop.f32.mrf.mxu0
          %v988 = vadd.f32 %v891, %v987
          %989 = vdwg.mxu0
          %v990 = vmax.f32 %v951, 0.0
          %v991 = vmax.f32 %v953, 0.0
          %v992 = vmax.f32 %v956, 0.0
          %v993 = vmax.f32 %v958, 0.0
          %v994 = vmax.f32 %v961, 0.0
          %v995 = vmax.f32 %v963, 0.0
          %v996 = vmax.f32 %v966, 0.0
          %v997 = vmax.f32 %v968, 0.0
          %v998 = vmax.f32 %v971, 0.0
          %v999 = vmax.f32 %v973, 0.0
          %v1000 = vmax.f32 %v976, 0.0
          %v1001 = vmax.f32 %v978, 0.0
          %v1002 = vmax.f32 %v981, 0.0
          %v1003 = vmax.f32 %v983, 0.0
          %v1004 = vmax.f32 %v986, 0.0
          %v1005 = vmax.f32 %v988, 0.0
          %v1006 = vld [vmem:[%s491] sm:$0xff]
          %v1007 = vld [vmem:[%s491 + $0x8] sm:$0xff]
          %v1008 = vld [vmem:[%s491 + $0x10] sm:$0xff]
          %v1009 = vld [vmem:[%s491 + $0x18] sm:$0xff]
          %v1010 = vld [vmem:[%s491 + $0x20] sm:$0xff]
          %v1011 = vld [vmem:[%s491 + $0x28] sm:$0xff]
          %v1012 = vld [vmem:[%s491 + $0x30] sm:$0xff]
          %v1013 = vld [vmem:[%s491 + $0x38] sm:$0xff]
          %v1014 = vld [vmem:[%s491 + $0x40] sm:$0xff]
          %v1015 = vld [vmem:[%s491 + $0x48] sm:$0xff]
          %v1016 = vld [vmem:[%s491 + $0x50] sm:$0xff]
          %v1017 = vld [vmem:[%s491 + $0x58] sm:$0xff]
          %v1018 = vld [vmem:[%s491 + $0x60] sm:$0xff]
          %v1019 = vld [vmem:[%s491 + $0x68] sm:$0xff]
          %v1020 = vld [vmem:[%s491 + $0x70] sm:$0xff]
          %v1021 = vld [vmem:[%s491 + $0x78] sm:$0xff]
          %v1022 = vadd.f32 %v990, %v1006
          %v1023 = vadd.f32 %v991, %v1007
          %v1024 = vadd.f32 %v992, %v1008
          %v1025 = vadd.f32 %v993, %v1009
          %v1026 = vadd.f32 %v994, %v1010
          %v1027 = vadd.f32 %v995, %v1011
          %v1028 = vadd.f32 %v996, %v1012
          %v1029 = vadd.f32 %v997, %v1013
          %v1030 = vadd.f32 %v998, %v1014
          %v1031 = vadd.f32 %v999, %v1015
          %v1032 = vadd.f32 %v1000, %v1016
          %v1033 = vadd.f32 %v1001, %v1017
          %v1034 = vadd.f32 %v1002, %v1018
          %v1035 = vadd.f32 %v1003, %v1019
          %v1036 = vadd.f32 %v1004, %v1020
          %v1037 = vadd.f32 %v1005, %v1021
          %v1038 = vld [vmem:[%s7] sm:$0x1]
          %v1040 = vperm.slane %v1038, 0
          %v1042 = vmul.f32 %v1022, %v1040
          %v1043 = vmul.f32 %v1023, %v1040
          %v1044 = vmul.f32 %v1024, %v1040
          %v1045 = vmul.f32 %v1025, %v1040
          %v1046 = vmul.f32 %v1026, %v1040
          %v1047 = vmul.f32 %v1027, %v1040
          %v1048 = vmul.f32 %v1028, %v1040
          %v1049 = vmul.f32 %v1029, %v1040
          %v1050 = vmul.f32 %v1030, %v1040
          %v1051 = vmul.f32 %v1031, %v1040
          %v1052 = vmul.f32 %v1032, %v1040
          %v1053 = vmul.f32 %v1033, %v1040
          %v1054 = vmul.f32 %v1034, %v1040
          %v1055 = vmul.f32 %v1035, %v1040
          %v1056 = vmul.f32 %v1036, %v1040
          %v1057 = vmul.f32 %v1037, %v1040
          %v1058 = vld [vmem:[%s8] sm:$0x1]
          %v1060 = vperm.slane %v1058, 0
          %v1062 = vadd.f32 %v1042, %v1060
          %v1063 = vadd.f32 %v1043, %v1060
          %v1064 = vadd.f32 %v1044, %v1060
          %v1065 = vadd.f32 %v1045, %v1060
          %v1066 = vadd.f32 %v1046, %v1060
          %v1067 = vadd.f32 %v1047, %v1060
          %v1068 = vadd.f32 %v1048, %v1060
          %v1069 = vadd.f32 %v1049, %v1060
          %v1070 = vadd.f32 %v1050, %v1060
          %v1071 = vadd.f32 %v1051, %v1060
          %v1072 = vadd.f32 %v1052, %v1060
          %v1073 = vadd.f32 %v1053, %v1060
          %v1074 = vadd.f32 %v1054, %v1060
          %v1075 = vadd.f32 %v1055, %v1060
          %v1076 = vadd.f32 %v1056, %v1060
          %v1077 = vadd.f32 %v1057, %v1060
          %1078 = vst [vmem:[%s497] sm:$0xff] %v1062
          %1079 = vst [vmem:[%s497 + $0x8] sm:$0xff] %v1063
          %1080 = vst [vmem:[%s497 + $0x10] sm:$0xff] %v1064
          %1081 = vst [vmem:[%s497 + $0x18] sm:$0xff] %v1065
          %1082 = vst [vmem:[%s497 + $0x20] sm:$0xff] %v1066
          %1083 = vst [vmem:[%s497 + $0x28] sm:$0xff] %v1067
          %1084 = vst [vmem:[%s497 + $0x30] sm:$0xff] %v1068
          %1085 = vst [vmem:[%s497 + $0x38] sm:$0xff] %v1069
          %1086 = vst [vmem:[%s497 + $0x40] sm:$0xff] %v1070
          %1087 = vst [vmem:[%s497 + $0x48] sm:$0xff] %v1071
          %1088 = vst [vmem:[%s497 + $0x50] sm:$0xff] %v1072
          %1089 = vst [vmem:[%s497 + $0x58] sm:$0xff] %v1073
          %1090 = vst [vmem:[%s497 + $0x60] sm:$0xff] %v1074
          %1091 = vst [vmem:[%s497 + $0x68] sm:$0xff] %v1075
          %1092 = vst [vmem:[%s497 + $0x70] sm:$0xff] %v1076
          %1093 = vst [vmem:[%s497 + $0x78] sm:$0xff] %v1077
        $region105: #{fgcn_forward.5} parent=92 // pred_fallthru
          _
        %s1094 = smul.u32 16, %s24
        %p1095 = scmp.lt.s32.totalorder %s1094, 31
        %s1096 = scalar_select %p1095, %s1094, 31
        %s1097 = smul.addr %s1096, 8
        %s1098 = scalar_lea.vmem %s9, %s1097
        // Predicated region
        $region106: #{fgcn_forward.5} parent=92 // pred_check
          %p1099 = pneg %p256
        $region107: #{fgcn_forward.5} parent=92 // pred_check_branch
          %1101 = sbr.rel (%p1099) target = $region109
        $region108: #{fgcn_forward.5} parent=92 // pred_region
          %s1102 = smul.u32 16, %s24
        $region109: #{fgcn_forward.5} parent=92 // pred_fallthru
          _
      $region93: #{fgcn_forward.5} parent=5 // pred_fallthru
        _
      %p1103 = scmp.le.s32.totalorder 2, %s15
      // Predicated region
      $region110: #{fgcn_forward.5} parent=5 // pred_check
        %p1104 = pneg %p1103
      $region111: #{fgcn_forward.5} parent=5 // pred_check_branch
        %1106 = sbr.rel (%p1104) target = $region113
      $region112: #{fgcn_forward.5} parent=5 // pred_region
        %s1107 = ssub.s32 %s15, 2
        // Predicated region
        $region114: #{fgcn_forward.5} parent=112 // pred_check
          %p1108 = pneg %p262
        $region115: #{fgcn_forward.5} parent=112 // pred_check_branch
          %1110 = sbr.rel (%p1108) target = $region117
        $region116: #{fgcn_forward.5} parent=112 // pred_region
          %s1111 = smul.u32 16, %s26
          %p1112 = scmp.lt.s32.totalorder %s1111, 31
          %s1113 = scalar_select %p1112, %s1111, 31
          %s1114 = smul.addr %s1113, 8
          %s1115 = scalar_lea.vmem %s9, %s1114
        $region117: #{fgcn_forward.5} parent=112 // pred_fallthru
          _
      $region113: #{fgcn_forward.5} parent=5 // pred_fallthru
        _
    $region6: #{fgcn_forward.5} parent=1 // loop_footer
      %s19 = sadd.s32 1, %s15
    $region7: #{fgcn_forward.5} parent=1 // loop_footer_branch
      %14 = sbr.rel target = $region3
    $region8: #{fgcn_forward.5} parent=1 // loop_exit
      _

</llo_original>
